<compile_context>
chip_gen: v7x
topology: tpu7x:2x2x1
jax: 0.10.0
libtpu: 0.0.40
codegen_flags: <defaults>
</compile_context>

<pallas_src>
import functools

import jax
import jax.numpy as jnp
from jax import lax
from jax.experimental import pallas as pl
from jax.experimental.pallas import tpu as pltpu

_LANE = 128
_BF16_SUBLANE = 16               # bf16 packs 16 rows per sublane tile
_MXU_DTYPE = jnp.bfloat16        # MXU operand dtype (f32 accumulate)
_NEG_BIG = -1e30


def _round_up(v, m):
    return ((v + m - 1) // m) * m


def _hyper_atten_kernel(x_ref, h_ref,
                        w1_ref, a1_ref, hmask1_ref, b1_ref,
                        w2_ref, a2_ref, b2_ref,
                        o_ref, *, heads1, num_classes, neg_slope):
    """Fused forward: conv1(attention) -> relu -> (dropout: identity) -> conv2 -> log_softmax."""
    H = h_ref[...]                                    # (Np, Ep) f32 dense incidence, zero-padded
    mask = H > 0.0                                    # incidence mask (padded cols inert)
    deg_n = jnp.sum(H, axis=1, keepdims=True)         # (Np, 1)  node degree     (PyG "D")
    deg_e = jnp.sum(H, axis=0, keepdims=True)         # (1, Ep)  hyperedge degree (PyG "B")
    has_edge = deg_n > 0.0
    # EUP approximate reciprocals, guarded so 1/0 -> 0.
    inv_dn = jnp.where(has_edge, pl.reciprocal(deg_n, approx=True), 0.0)
    inv_be = jnp.where(deg_e > 0.0, pl.reciprocal(deg_e, approx=True), 0.0)

    def hconv(x_bf, W_bf, A_bf, h_mask, bias, heads):
        # shared linear transform (PyG applies self.lin to x and hyperedge_attr); by linearity
        # the hyperedge attention term is derived from x_lin, he_lin is never materialized.
        x_lin = jnp.dot(x_bf, W_bf, preferred_element_type=jnp.float32)       # (Np, Fp) f32
        x_lin_bf = x_lin.astype(_MXU_DTYPE)
        # all heads' src/dst attention dot-products in one MXU matmul:
        #   sc[:, h]         = x_lin[:, head-h cols] . att_src_h
        #   sc[:, heads + h] = x_lin[:, head-h cols] . att_dst_h
        sc = jnp.dot(x_lin_bf, A_bf, preferred_element_type=jnp.float32)      # (Np, 128)
        out = jnp.zeros_like(x_lin)
        for h in range(heads):                                                # static: 2 / 1
            s_n = sc[:, h:h + 1]                                              # (Np, 1)
            t = sc[:, heads + h:heads + h + 1]                                # (Np, 1)
            # hyperedge part via linearity: (H^T x_lin).att_dst == H^T (x_lin.att_dst)
            # (sum aggregation, matching hyperedge_representation's scatter_add)
            s_e = jnp.sum(H * t, axis=0, keepdims=True)                       # (1, Ep)
            score = s_n + s_e                                                 # (Np, Ep)
            score = jnp.maximum(score, neg_slope * score)                     # leaky_relu
            # PyG softmax grouped by node == masked row softmax over incident hyperedges
            m = jnp.max(jnp.where(mask, score, _NEG_BIG), axis=-1, keepdims=True)
            m = jnp.where(has_edge, m, 0.0)                                   # guard isolated rows
            p = jnp.where(mask, jnp.exp(score - m), 0.0)                      # (Np, Ep)
            denom = jnp.sum(p, axis=-1, keepdims=True)
            alpha = p * jnp.where(denom > 0.0, 1.0 / denom, 0.0)              # exact reciprocal
            alpha_bf = alpha.astype(_MXU_DTYPE)
            # head selection by masking feature columns keeps the heads*F axis lane-dense
            # (no per-head slices, no concatenate; off-head / padded columns stay zero).
            if heads == 1:
                xh_bf = x_lin_bf
            else:
                xh_bf = (x_lin * h_mask[h:h + 1, :]).astype(_MXU_DTYPE)
            # propagate 1 (nodes -> hyperedges); B folded onto alpha's hyperedge columns
            out_e = jnp.einsum('ne,nf->ef',
                               (alpha * inv_be).astype(_MXU_DTYPE), xh_bf,
                               preferred_element_type=jnp.float32)            # (Ep, Fp)
            # propagate 2 (hyperedges -> nodes); D scaling / bias hoisted out of the loop
            out = out + jnp.dot(alpha_bf, out_e.astype(_MXU_DTYPE),
                                preferred_element_type=jnp.float32)
        return inv_dn * out + bias

    # conv1 (multi-head) + relu; F.dropout(p=0.5, training=False) is the identity.
    x1 = hconv(x_ref[...], w1_ref[...], a1_ref[...], hmask1_ref[...], b1_ref[...], heads1)
    x1 = jnp.maximum(x1, 0.0)

    # conv2 (heads=1) + log_softmax over the real (unpadded) classes.
    logits = hconv(x1.astype(_MXU_DTYPE), w2_ref[...], a2_ref[...], None, b2_ref[...], 1)
    valid = lax.broadcasted_iota(jnp.int32, logits.shape, 1) < num_classes
    m2 = jnp.max(jnp.where(valid, logits, _NEG_BIG), axis=-1, keepdims=True)
    z = logits - m2
    sum_exp = jnp.sum(jnp.where(valid, jnp.exp(z), 0.0), axis=-1, keepdims=True)
    logp = z - jnp.log(sum_exp)
    o_ref[...] = jnp.where(valid, logp, 0.0).astype(o_ref.dtype)


def hyper_atten_forward(x, H, W1, att1, b1, W2, att2, b2, *,
                        heads, dim, num_classes, negative_slope=0.2):
    """Host wrapper: zero-pad to lane-dense bf16/f32 slabs, run one fused pallas_call, slice."""
    N, Cin = x.shape
    E = H.shape[1]
    Np = _round_up(N, _BF16_SUBLANE)
    Ep = _round_up(E, _LANE)
    F1 = heads * dim
    F1p = _round_up(F1, _LANE)
    Cp = _round_up(num_classes, _LANE)

    f32, bf16 = jnp.float32, _MXU_DTYPE

    # ---- host-side zero padding / parameter re-layout (layout glue, not compute) ----
    x_p = jnp.zeros((Np, Cin), f32).at[:N].set(x).astype(bf16)
    H_p = jnp.zeros((Np, Ep), f32).at[:N, :E].set(H)

    W1_p = jnp.zeros((Cin, F1p), f32).at[:, :F1].set(W1).astype(bf16)
    b1_p = jnp.zeros((1, F1p), f32).at[0, :F1].set(b1)
    # pack every head's att_src (column h) and att_dst (column heads+h) into one 128-lane slab,
    # plus head-selection masks over the heads*F feature axis.
    A1 = jnp.zeros((F1p, _LANE), f32)
    hmask1 = jnp.zeros((heads, F1p), f32)
    for h in range(heads):
        A1 = A1.at[h * dim:(h + 1) * dim, h].set(att1[h, :dim])
        A1 = A1.at[h * dim:(h + 1) * dim, heads + h].set(att1[h, dim:])
        hmask1 = hmask1.at[h, h * dim:(h + 1) * dim].set(1.0)
    A1 = A1.astype(bf16)

    W2_p = jnp.zeros((F1p, Cp), f32).at[:F1, :num_classes].set(W2).astype(bf16)
    b2_p = jnp.zeros((1, Cp), f32).at[0, :num_classes].set(b2)
    A2 = jnp.zeros((Cp, _LANE), f32)
    A2 = A2.at[:num_classes, 0].set(att2[0, :num_classes])
    A2 = A2.at[:num_classes, 1].set(att2[0, num_classes:])
    A2 = A2.astype(bf16)

    kern = functools.partial(_hyper_atten_kernel, heads1=heads,
                             num_classes=num_classes, neg_slope=negative_slope)

    def full(shape):
        return pl.BlockSpec(shape, lambda i: (0, 0))

    out = pl.pallas_call(
        kern,
        out_shape=jax.ShapeDtypeStruct((Np, Cp), jnp.float32),
        grid=(1,),
        in_specs=[full(x_p.shape), full(H_p.shape),
                  full(W1_p.shape), full(A1.shape), full(hmask1.shape), full(b1_p.shape),
                  full(W2_p.shape), full(A2.shape), full(b2_p.shape)],
        out_specs=pl.BlockSpec((Np, Cp), lambda i: (0, 0)),
        compiler_params=pltpu.CompilerParams(
            dimension_semantics=("arbitrary",),
            vmem_limit_bytes=32 * 1024 * 1024),
    )(x_p, H_p, W1_p, A1, hmask1, b1_p, W2_p, A2, b2_p)
    return out[:N, :num_classes]


def _glorot(key, shape):
    fan_in, fan_out = shape[0], shape[-1]
    limit = jnp.sqrt(6.0 / (fan_in + fan_out))
    return jax.random.uniform(key, shape, jnp.float32, -limit, limit)


if __name__ == "__main__":
    key = jax.random.PRNGKey(0)
    N, E = 16, 8
    info = dict(num_node_features=64, num_classes=4,
                is_regression=False, is_edge_pred=False)
    dim = 32
    heads = info['num_node_features'] // dim   # = 2

    k_x, k_w1, k_a1, k_w2, k_a2 = jax.random.split(key, 5)
    x = jax.random.normal(k_x, (N, info['num_node_features']), jnp.float32)

    # deterministic hyperedge incidence list (2, nnz): each node in 2 hyperedges
    nodes = jnp.arange(N, dtype=jnp.int32)
    e1 = nodes % E
    e2 = (3 * nodes + 1) % E
    hyperedge_index = jnp.stack([jnp.concatenate([nodes, nodes]),
                                 jnp.concatenate([e1, e2])])

    # densify incidence list -> dense (N, E) incidence matrix (layout glue)
    H = jnp.zeros((N, E), jnp.float32).at[hyperedge_index[0],
                                          hyperedge_index[1]].add(1.0)

    # conv1: HypergraphConv(64, 32, heads=2, use_attention=True): glorot lin/att, zero bias
    W1 = _glorot(k_w1, (info['num_node_features'], heads * dim))
    att1 = _glorot(k_a1, (heads, 2 * dim))
    b1 = jnp.zeros((heads * dim,), jnp.float32)
    # conv2: HypergraphConv(64, num_classes, heads=1, use_attention=True)
    W2 = _glorot(k_w2, (heads * dim, info['num_classes']))
    att2 = _glorot(k_a2, (1, 2 * info['num_classes']))
    b2 = jnp.zeros((info['num_classes'],), jnp.float32)

    logp = hyper_atten_forward(x, H, W1, att1, b1, W2, att2, b2,
                               heads=heads, dim=dim,
                               num_classes=info['num_classes'])
    logp = jax.block_until_ready(logp)

    assert logp.shape == (N, info['num_classes'])
    assert bool(jnp.all(jnp.isfinite(logp)))
    print("KERNEL_OK")
</pallas_src>

<mosaic_0001>
module attributes {stable_mosaic.version = 11 : i64} {
  func.func @_hyper_atten_kernel(%arg0: i32, %arg1: memref<16x64xbf16, #tpu.memory_space<vmem>>, %arg2: memref<16x128xf32, #tpu.memory_space<vmem>>, %arg3: memref<64x128xbf16, #tpu.memory_space<vmem>>, %arg4: memref<128x128xbf16, #tpu.memory_space<vmem>>, %arg5: memref<2x128xf32, #tpu.memory_space<vmem>>, %arg6: memref<1x128xf32, #tpu.memory_space<vmem>>, %arg7: memref<128x128xbf16, #tpu.memory_space<vmem>>, %arg8: memref<128x128xbf16, #tpu.memory_space<vmem>>, %arg9: memref<1x128xf32, #tpu.memory_space<vmem>>, %arg10: memref<16x128xf32, #tpu.memory_space<vmem>>) attributes {dimension_semantics = [#tpu.dimension_semantics<arbitrary>], iteration_bounds = array<i64: 1>, scalar_prefetch = 0 : i64, scratch_operands = 0 : i64, tpu.core_type = #tpu.core_type<tc>, window_params = [{pipeline_mode = #tpu.pipeline_mode<synchronous>, transform_indices = @transform_0, window_bounds = array<i64: 16, 64>}, {pipeline_mode = #tpu.pipeline_mode<synchronous>, transform_indices = @transform_1, window_bounds = array<i64: 16, 128>}, {pipeline_mode = #tpu.pipeline_mode<synchronous>, transform_indices = @transform_2, window_bounds = array<i64: 64, 128>}, {pipeline_mode = #tpu.pipeline_mode<synchronous>, transform_indices = @transform_3, window_bounds = array<i64: 128, 128>}, {pipeline_mode = #tpu.pipeline_mode<synchronous>, transform_indices = @transform_4, window_bounds = array<i64: 2, 128>}, {pipeline_mode = #tpu.pipeline_mode<synchronous>, transform_indices = @transform_5, window_bounds = array<i64: 1, 128>}, {pipeline_mode = #tpu.pipeline_mode<synchronous>, transform_indices = @transform_6, window_bounds = array<i64: 128, 128>}, {pipeline_mode = #tpu.pipeline_mode<synchronous>, transform_indices = @transform_7, window_bounds = array<i64: 128, 128>}, {pipeline_mode = #tpu.pipeline_mode<synchronous>, transform_indices = @transform_8, window_bounds = array<i64: 1, 128>}, {pipeline_mode = #tpu.pipeline_mode<synchronous>, transform_indices = @transform_9, window_bounds = array<i64: 16, 128>}]} {
    %c0 = arith.constant 0 : index
    %c0_0 = arith.constant 0 : index
    %0 = vector.load %arg2[%c0, %c0_0] : memref<16x128xf32, #tpu.memory_space<vmem>>, vector<16x128xf32>
    %cst = arith.constant 0.000000e+00 : f32
    %1 = vector.broadcast %cst : f32 to vector<16x128xf32>
    %2 = arith.cmpf ogt, %0, %1 : vector<16x128xf32>
    %cst_1 = arith.constant dense<0.000000e+00> : vector<16xf32>
    %3 = vector.multi_reduction <add>, %0, %cst_1 [1] : vector<16x128xf32> to vector<16xf32>
    %4 = vector.shape_cast %3 : vector<16xf32> to vector<16x1xf32>
    %cst_2 = arith.constant dense<0.000000e+00> : vector<128xf32>
    %5 = vector.multi_reduction <add>, %0, %cst_2 [0] : vector<16x128xf32> to vector<128xf32>
    %6 = vector.shape_cast %5 : vector<128xf32> to vector<1x128xf32>
    %cst_3 = arith.constant 0.000000e+00 : f32
    %7 = vector.broadcast %cst_3 : f32 to vector<16x1xf32>
    %8 = arith.cmpf ogt, %4, %7 : vector<16x1xf32>
    %9 = tpu.reciprocal %4 {approx = true} : vector<16x1xf32> -> vector<16x1xf32>
    %cst_4 = arith.constant 0.000000e+00 : f32
    %10 = vector.broadcast %cst_4 : f32 to vector<16x1xf32>
    %11 = arith.select %8, %9, %10 : vector<16x1xi1>, vector<16x1xf32>
    %cst_5 = arith.constant 0.000000e+00 : f32
    %12 = vector.broadcast %cst_5 : f32 to vector<1x128xf32>
    %13 = arith.cmpf ogt, %6, %12 : vector<1x128xf32>
    %14 = tpu.reciprocal %6 {approx = true} : vector<1x128xf32> -> vector<1x128xf32>
    %cst_6 = arith.constant 0.000000e+00 : f32
    %15 = vector.broadcast %cst_6 : f32 to vector<1x128xf32>
    %16 = arith.select %13, %14, %15 : vector<1x128xi1>, vector<1x128xf32>
    %c0_7 = arith.constant 0 : index
    %c0_8 = arith.constant 0 : index
    %17 = vector.load %arg1[%c0_7, %c0_8] : memref<16x64xbf16, #tpu.memory_space<vmem>>, vector<16x64xbf16>
    %c0_9 = arith.constant 0 : index
    %c0_10 = arith.constant 0 : index
    %18 = vector.load %arg3[%c0_9, %c0_10] : memref<64x128xbf16, #tpu.memory_space<vmem>>, vector<64x128xbf16>
    %c0_11 = arith.constant 0 : index
    %c0_12 = arith.constant 0 : index
    %19 = vector.load %arg4[%c0_11, %c0_12] : memref<128x128xbf16, #tpu.memory_space<vmem>>, vector<128x128xbf16>
    %c0_13 = arith.constant 0 : index
    %c0_14 = arith.constant 0 : index
    %20 = vector.load %arg5[%c0_13, %c0_14] : memref<2x128xf32, #tpu.memory_space<vmem>>, vector<2x128xf32>
    %c0_15 = arith.constant 0 : index
    %c0_16 = arith.constant 0 : index
    %21 = vector.load %arg6[%c0_15, %c0_16] : memref<1x128xf32, #tpu.memory_space<vmem>>, vector<1x128xf32>
    %cst_17 = arith.constant dense<0.000000e+00> : vector<16x128xf32>
    %22 = tpu.matmul %17, %18, %cst_17 {dimension_numbers = #tpu.dot_dimension_numbers<[1], [0], [0], [1], [0, 0, 1, 1], [], []>} : vector<16x64xbf16>, vector<64x128xbf16>, vector<16x128xf32> -> vector<16x128xf32>
    %23 = arith.truncf %22 : vector<16x128xf32> to vector<16x128xbf16>
    %cst_18 = arith.constant dense<0.000000e+00> : vector<16x128xf32>
    %24 = tpu.matmul %23, %19, %cst_18 {dimension_numbers = #tpu.dot_dimension_numbers<[1], [0], [0], [1], [0, 0, 1, 1], [], []>} : vector<16x128xbf16>, vector<128x128xbf16>, vector<16x128xf32> -> vector<16x128xf32>
    %cst_19 = arith.constant 0.000000e+00 : f32
    %25 = vector.broadcast %cst_19 : f32 to vector<16x128xf32>
    %26 = vector.extract_strided_slice %24 {offsets = [0, 0], sizes = [16, 1], strides = [1, 1]} : vector<16x128xf32> to vector<16x1xf32>
    %27 = vector.extract_strided_slice %24 {offsets = [0, 2], sizes = [16, 1], strides = [1, 1]} : vector<16x128xf32> to vector<16x1xf32>
    %28 = vector.broadcast %27 : vector<16x1xf32> to vector<16x128xf32>
    %29 = arith.mulf %0, %28 : vector<16x128xf32>
    %cst_20 = arith.constant dense<0.000000e+00> : vector<128xf32>
    %30 = vector.multi_reduction <add>, %29, %cst_20 [0] : vector<16x128xf32> to vector<128xf32>
    %31 = vector.shape_cast %30 : vector<128xf32> to vector<1x128xf32>
    %32 = vector.broadcast %26 : vector<16x1xf32> to vector<16x128xf32>
    %33 = vector.broadcast %31 : vector<1x128xf32> to vector<16x128xf32>
    %34 = arith.addf %32, %33 : vector<16x128xf32>
    %cst_21 = arith.constant 2.000000e-01 : f32
    %35 = vector.broadcast %cst_21 : f32 to vector<16x128xf32>
    %36 = arith.mulf %35, %34 : vector<16x128xf32>
    %37 = arith.maximumf %34, %36 : vector<16x128xf32>
    %cst_22 = arith.constant -1.000000e+30 : f32
    %38 = vector.broadcast %cst_22 : f32 to vector<16x128xf32>
    %39 = arith.select %2, %37, %38 : vector<16x128xi1>, vector<16x128xf32>
    %cst_23 = arith.constant dense<0xFF800000> : vector<16xf32>
    %40 = vector.multi_reduction <maximumf>, %39, %cst_23 [1] : vector<16x128xf32> to vector<16xf32>
    %41 = vector.shape_cast %40 : vector<16xf32> to vector<16x1xf32>
    %cst_24 = arith.constant 0.000000e+00 : f32
    %42 = vector.broadcast %cst_24 : f32 to vector<16x1xf32>
    %43 = arith.select %8, %41, %42 : vector<16x1xi1>, vector<16x1xf32>
    %44 = vector.broadcast %43 : vector<16x1xf32> to vector<16x128xf32>
    %45 = arith.subf %37, %44 : vector<16x128xf32>
    %46 = math.exp %45 : vector<16x128xf32>
    %cst_25 = arith.constant 0.000000e+00 : f32
    %47 = vector.broadcast %cst_25 : f32 to vector<16x128xf32>
    %48 = arith.select %2, %46, %47 : vector<16x128xi1>, vector<16x128xf32>
    %cst_26 = arith.constant dense<0.000000e+00> : vector<16xf32>
    %49 = vector.multi_reduction <add>, %48, %cst_26 [1] : vector<16x128xf32> to vector<16xf32>
    %50 = vector.shape_cast %49 : vector<16xf32> to vector<16x1xf32>
    %cst_27 = arith.constant 0.000000e+00 : f32
    %51 = vector.broadcast %cst_27 : f32 to vector<16x1xf32>
    %52 = arith.cmpf ogt, %50, %51 : vector<16x1xf32>
    %cst_28 = arith.constant 1.000000e+00 : f32
    %53 = vector.broadcast %cst_28 : f32 to vector<16x1xf32>
    %54 = arith.divf %53, %50 : vector<16x1xf32>
    %cst_29 = arith.constant 0.000000e+00 : f32
    %55 = vector.broadcast %cst_29 : f32 to vector<16x1xf32>
    %56 = arith.select %52, %54, %55 : vector<16x1xi1>, vector<16x1xf32>
    %57 = vector.broadcast %56 : vector<16x1xf32> to vector<16x128xf32>
    %58 = arith.mulf %48, %57 : vector<16x128xf32>
    %59 = arith.truncf %58 : vector<16x128xf32> to vector<16x128xbf16>
    %60 = vector.extract_strided_slice %20 {offsets = [0, 0], sizes = [1, 128], strides = [1, 1]} : vector<2x128xf32> to vector<1x128xf32>
    %61 = vector.broadcast %60 : vector<1x128xf32> to vector<16x128xf32>
    %62 = arith.mulf %22, %61 : vector<16x128xf32>
    %63 = arith.truncf %62 : vector<16x128xf32> to vector<16x128xbf16>
    %64 = vector.broadcast %16 : vector<1x128xf32> to vector<16x128xf32>
    %65 = arith.mulf %58, %64 : vector<16x128xf32>
    %66 = arith.truncf %65 : vector<16x128xf32> to vector<16x128xbf16>
    "tpu.trace_start"() <{level = 10 : i32, message = "ne,nf->ef"}> : () -> ()
    %cst_30 = arith.constant dense<0.000000e+00> : vector<128x128xf32>
    %67 = tpu.matmul %66, %63, %cst_30 {dimension_numbers = #tpu.dot_dimension_numbers<[0], [0], [1], [1], [0, 1, 1, 1], [], []>} : vector<16x128xbf16>, vector<16x128xbf16>, vector<128x128xf32> -> vector<128x128xf32>
    "tpu.trace_stop"() : () -> ()
    %68 = arith.truncf %67 : vector<128x128xf32> to vector<128x128xbf16>
    %cst_31 = arith.constant dense<0.000000e+00> : vector<16x128xf32>
    %69 = tpu.matmul %59, %68, %cst_31 {dimension_numbers = #tpu.dot_dimension_numbers<[1], [0], [0], [1], [0, 0, 1, 1], [], []>} : vector<16x128xbf16>, vector<128x128xbf16>, vector<16x128xf32> -> vector<16x128xf32>
    %70 = arith.addf %25, %69 : vector<16x128xf32>
    %71 = vector.extract_strided_slice %24 {offsets = [0, 1], sizes = [16, 1], strides = [1, 1]} : vector<16x128xf32> to vector<16x1xf32>
    %72 = vector.extract_strided_slice %24 {offsets = [0, 3], sizes = [16, 1], strides = [1, 1]} : vector<16x128xf32> to vector<16x1xf32>
    %73 = vector.broadcast %72 : vector<16x1xf32> to vector<16x128xf32>
    %74 = arith.mulf %0, %73 : vector<16x128xf32>
    %cst_32 = arith.constant dense<0.000000e+00> : vector<128xf32>
    %75 = vector.multi_reduction <add>, %74, %cst_32 [0] : vector<16x128xf32> to vector<128xf32>
    %76 = vector.shape_cast %75 : vector<128xf32> to vector<1x128xf32>
    %77 = vector.broadcast %71 : vector<16x1xf32> to vector<16x128xf32>
    %78 = vector.broadcast %76 : vector<1x128xf32> to vector<16x128xf32>
    %79 = arith.addf %77, %78 : vector<16x128xf32>
    %cst_33 = arith.constant 2.000000e-01 : f32
    %80 = vector.broadcast %cst_33 : f32 to vector<16x128xf32>
    %81 = arith.mulf %80, %79 : vector<16x128xf32>
    %82 = arith.maximumf %79, %81 : vector<16x128xf32>
    %cst_34 = arith.constant -1.000000e+30 : f32
    %83 = vector.broadcast %cst_34 : f32 to vector<16x128xf32>
    %84 = arith.select %2, %82, %83 : vector<16x128xi1>, vector<16x128xf32>
    %cst_35 = arith.constant dense<0xFF800000> : vector<16xf32>
    %85 = vector.multi_reduction <maximumf>, %84, %cst_35 [1] : vector<16x128xf32> to vector<16xf32>
    %86 = vector.shape_cast %85 : vector<16xf32> to vector<16x1xf32>
    %cst_36 = arith.constant 0.000000e+00 : f32
    %87 = vector.broadcast %cst_36 : f32 to vector<16x1xf32>
    %88 = arith.select %8, %86, %87 : vector<16x1xi1>, vector<16x1xf32>
    %89 = vector.broadcast %88 : vector<16x1xf32> to vector<16x128xf32>
    %90 = arith.subf %82, %89 : vector<16x128xf32>
    %91 = math.exp %90 : vector<16x128xf32>
    %cst_37 = arith.constant 0.000000e+00 : f32
    %92 = vector.broadcast %cst_37 : f32 to vector<16x128xf32>
    %93 = arith.select %2, %91, %92 : vector<16x128xi1>, vector<16x128xf32>
    %cst_38 = arith.constant dense<0.000000e+00> : vector<16xf32>
    %94 = vector.multi_reduction <add>, %93, %cst_38 [1] : vector<16x128xf32> to vector<16xf32>
    %95 = vector.shape_cast %94 : vector<16xf32> to vector<16x1xf32>
    %cst_39 = arith.constant 0.000000e+00 : f32
    %96 = vector.broadcast %cst_39 : f32 to vector<16x1xf32>
    %97 = arith.cmpf ogt, %95, %96 : vector<16x1xf32>
    %cst_40 = arith.constant 1.000000e+00 : f32
    %98 = vector.broadcast %cst_40 : f32 to vector<16x1xf32>
    %99 = arith.divf %98, %95 : vector<16x1xf32>
    %cst_41 = arith.constant 0.000000e+00 : f32
    %100 = vector.broadcast %cst_41 : f32 to vector<16x1xf32>
    %101 = arith.select %97, %99, %100 : vector<16x1xi1>, vector<16x1xf32>
    %102 = vector.broadcast %101 : vector<16x1xf32> to vector<16x128xf32>
    %103 = arith.mulf %93, %102 : vector<16x128xf32>
    %104 = arith.truncf %103 : vector<16x128xf32> to vector<16x128xbf16>
    %105 = vector.extract_strided_slice %20 {offsets = [1, 0], sizes = [1, 128], strides = [1, 1]} : vector<2x128xf32> to vector<1x128xf32>
    %106 = vector.broadcast %105 : vector<1x128xf32> to vector<16x128xf32>
    %107 = arith.mulf %22, %106 : vector<16x128xf32>
    %108 = arith.truncf %107 : vector<16x128xf32> to vector<16x128xbf16>
    %109 = vector.broadcast %16 : vector<1x128xf32> to vector<16x128xf32>
    %110 = arith.mulf %103, %109 : vector<16x128xf32>
    %111 = arith.truncf %110 : vector<16x128xf32> to vector<16x128xbf16>
    "tpu.trace_start"() <{level = 10 : i32, message = "ne,nf->ef"}> : () -> ()
    %cst_42 = arith.constant dense<0.000000e+00> : vector<128x128xf32>
    %112 = tpu.matmul %111, %108, %cst_42 {dimension_numbers = #tpu.dot_dimension_numbers<[0], [0], [1], [1], [0, 1, 1, 1], [], []>} : vector<16x128xbf16>, vector<16x128xbf16>, vector<128x128xf32> -> vector<128x128xf32>
    "tpu.trace_stop"() : () -> ()
    %113 = arith.truncf %112 : vector<128x128xf32> to vector<128x128xbf16>
    %cst_43 = arith.constant dense<0.000000e+00> : vector<16x128xf32>
    %114 = tpu.matmul %104, %113, %cst_43 {dimension_numbers = #tpu.dot_dimension_numbers<[1], [0], [0], [1], [0, 0, 1, 1], [], []>} : vector<16x128xbf16>, vector<128x128xbf16>, vector<16x128xf32> -> vector<16x128xf32>
    %115 = arith.addf %70, %114 : vector<16x128xf32>
    %116 = vector.broadcast %11 : vector<16x1xf32> to vector<16x128xf32>
    %117 = arith.mulf %116, %115 : vector<16x128xf32>
    %118 = vector.broadcast %21 : vector<1x128xf32> to vector<16x128xf32>
    %119 = arith.addf %117, %118 : vector<16x128xf32>
    %cst_44 = arith.constant 0.000000e+00 : f32
    %120 = vector.broadcast %cst_44 : f32 to vector<16x128xf32>
    %121 = arith.maximumf %119, %120 : vector<16x128xf32>
    %122 = arith.truncf %121 : vector<16x128xf32> to vector<16x128xbf16>
    %c0_45 = arith.constant 0 : index
    %c0_46 = arith.constant 0 : index
    %123 = vector.load %arg7[%c0_45, %c0_46] : memref<128x128xbf16, #tpu.memory_space<vmem>>, vector<128x128xbf16>
    %c0_47 = arith.constant 0 : index
    %c0_48 = arith.constant 0 : index
    %124 = vector.load %arg8[%c0_47, %c0_48] : memref<128x128xbf16, #tpu.memory_space<vmem>>, vector<128x128xbf16>
    %c0_49 = arith.constant 0 : index
    %c0_50 = arith.constant 0 : index
    %125 = vector.load %arg9[%c0_49, %c0_50] : memref<1x128xf32, #tpu.memory_space<vmem>>, vector<1x128xf32>
    %cst_51 = arith.constant dense<0.000000e+00> : vector<16x128xf32>
    %126 = tpu.matmul %122, %123, %cst_51 {dimension_numbers = #tpu.dot_dimension_numbers<[1], [0], [0], [1], [0, 0, 1, 1], [], []>} : vector<16x128xbf16>, vector<128x128xbf16>, vector<16x128xf32> -> vector<16x128xf32>
    %127 = arith.truncf %126 : vector<16x128xf32> to vector<16x128xbf16>
    %cst_52 = arith.constant dense<0.000000e+00> : vector<16x128xf32>
    %128 = tpu.matmul %127, %124, %cst_52 {dimension_numbers = #tpu.dot_dimension_numbers<[1], [0], [0], [1], [0, 0, 1, 1], [], []>} : vector<16x128xbf16>, vector<128x128xbf16>, vector<16x128xf32> -> vector<16x128xf32>
    %cst_53 = arith.constant 0.000000e+00 : f32
    %129 = vector.broadcast %cst_53 : f32 to vector<16x128xf32>
    %130 = vector.extract_strided_slice %128 {offsets = [0, 0], sizes = [16, 1], strides = [1, 1]} : vector<16x128xf32> to vector<16x1xf32>
    %131 = vector.extract_strided_slice %128 {offsets = [0, 1], sizes = [16, 1], strides = [1, 1]} : vector<16x128xf32> to vector<16x1xf32>
    %132 = vector.broadcast %131 : vector<16x1xf32> to vector<16x128xf32>
    %133 = arith.mulf %0, %132 : vector<16x128xf32>
    %cst_54 = arith.constant dense<0.000000e+00> : vector<128xf32>
    %134 = vector.multi_reduction <add>, %133, %cst_54 [0] : vector<16x128xf32> to vector<128xf32>
    %135 = vector.shape_cast %134 : vector<128xf32> to vector<1x128xf32>
    %136 = vector.broadcast %130 : vector<16x1xf32> to vector<16x128xf32>
    %137 = vector.broadcast %135 : vector<1x128xf32> to vector<16x128xf32>
    %138 = arith.addf %136, %137 : vector<16x128xf32>
    %cst_55 = arith.constant 2.000000e-01 : f32
    %139 = vector.broadcast %cst_55 : f32 to vector<16x128xf32>
    %140 = arith.mulf %139, %138 : vector<16x128xf32>
    %141 = arith.maximumf %138, %140 : vector<16x128xf32>
    %cst_56 = arith.constant -1.000000e+30 : f32
    %142 = vector.broadcast %cst_56 : f32 to vector<16x128xf32>
    %143 = arith.select %2, %141, %142 : vector<16x128xi1>, vector<16x128xf32>
    %cst_57 = arith.constant dense<0xFF800000> : vector<16xf32>
    %144 = vector.multi_reduction <maximumf>, %143, %cst_57 [1] : vector<16x128xf32> to vector<16xf32>
    %145 = vector.shape_cast %144 : vector<16xf32> to vector<16x1xf32>
    %cst_58 = arith.constant 0.000000e+00 : f32
    %146 = vector.broadcast %cst_58 : f32 to vector<16x1xf32>
    %147 = arith.select %8, %145, %146 : vector<16x1xi1>, vector<16x1xf32>
    %148 = vector.broadcast %147 : vector<16x1xf32> to vector<16x128xf32>
    %149 = arith.subf %141, %148 : vector<16x128xf32>
    %150 = math.exp %149 : vector<16x128xf32>
    %cst_59 = arith.constant 0.000000e+00 : f32
    %151 = vector.broadcast %cst_59 : f32 to vector<16x128xf32>
    %152 = arith.select %2, %150, %151 : vector<16x128xi1>, vector<16x128xf32>
    %cst_60 = arith.constant dense<0.000000e+00> : vector<16xf32>
    %153 = vector.multi_reduction <add>, %152, %cst_60 [1] : vector<16x128xf32> to vector<16xf32>
    %154 = vector.shape_cast %153 : vector<16xf32> to vector<16x1xf32>
    %cst_61 = arith.constant 0.000000e+00 : f32
    %155 = vector.broadcast %cst_61 : f32 to vector<16x1xf32>
    %156 = arith.cmpf ogt, %154, %155 : vector<16x1xf32>
    %cst_62 = arith.constant 1.000000e+00 : f32
    %157 = vector.broadcast %cst_62 : f32 to vector<16x1xf32>
    %158 = arith.divf %157, %154 : vector<16x1xf32>
    %cst_63 = arith.constant 0.000000e+00 : f32
    %159 = vector.broadcast %cst_63 : f32 to vector<16x1xf32>
    %160 = arith.select %156, %158, %159 : vector<16x1xi1>, vector<16x1xf32>
    %161 = vector.broadcast %160 : vector<16x1xf32> to vector<16x128xf32>
    %162 = arith.mulf %152, %161 : vector<16x128xf32>
    %163 = arith.truncf %162 : vector<16x128xf32> to vector<16x128xbf16>
    %164 = vector.broadcast %16 : vector<1x128xf32> to vector<16x128xf32>
    %165 = arith.mulf %162, %164 : vector<16x128xf32>
    %166 = arith.truncf %165 : vector<16x128xf32> to vector<16x128xbf16>
    "tpu.trace_start"() <{level = 10 : i32, message = "ne,nf->ef"}> : () -> ()
    %cst_64 = arith.constant dense<0.000000e+00> : vector<128x128xf32>
    %167 = tpu.matmul %166, %127, %cst_64 {dimension_numbers = #tpu.dot_dimension_numbers<[0], [0], [1], [1], [0, 1, 1, 1], [], []>} : vector<16x128xbf16>, vector<16x128xbf16>, vector<128x128xf32> -> vector<128x128xf32>
    "tpu.trace_stop"() : () -> ()
    %168 = arith.truncf %167 : vector<128x128xf32> to vector<128x128xbf16>
    %cst_65 = arith.constant dense<0.000000e+00> : vector<16x128xf32>
    %169 = tpu.matmul %163, %168, %cst_65 {dimension_numbers = #tpu.dot_dimension_numbers<[1], [0], [0], [1], [0, 0, 1, 1], [], []>} : vector<16x128xbf16>, vector<128x128xbf16>, vector<16x128xf32> -> vector<16x128xf32>
    %170 = arith.addf %129, %169 : vector<16x128xf32>
    %171 = vector.broadcast %11 : vector<16x1xf32> to vector<16x128xf32>
    %172 = arith.mulf %171, %170 : vector<16x128xf32>
    %173 = vector.broadcast %125 : vector<1x128xf32> to vector<16x128xf32>
    %174 = arith.addf %172, %173 : vector<16x128xf32>
    %175 = tpu.iota {dimensions = array<i32: 1>} : vector<16x128xi32>
    %c4_i32 = arith.constant 4 : i32
    %176 = vector.broadcast %c4_i32 : i32 to vector<16x128xi32>
    %177 = arith.cmpi slt, %175, %176 : vector<16x128xi32>
    %cst_66 = arith.constant -1.000000e+30 : f32
    %178 = vector.broadcast %cst_66 : f32 to vector<16x128xf32>
    %179 = arith.select %177, %174, %178 : vector<16x128xi1>, vector<16x128xf32>
    %cst_67 = arith.constant dense<0xFF800000> : vector<16xf32>
    %180 = vector.multi_reduction <maximumf>, %179, %cst_67 [1] : vector<16x128xf32> to vector<16xf32>
    %181 = vector.shape_cast %180 : vector<16xf32> to vector<16x1xf32>
    %182 = vector.broadcast %181 : vector<16x1xf32> to vector<16x128xf32>
    %183 = arith.subf %174, %182 : vector<16x128xf32>
    %184 = math.exp %183 : vector<16x128xf32>
    %cst_68 = arith.constant 0.000000e+00 : f32
    %185 = vector.broadcast %cst_68 : f32 to vector<16x128xf32>
    %186 = arith.select %177, %184, %185 : vector<16x128xi1>, vector<16x128xf32>
    %cst_69 = arith.constant dense<0.000000e+00> : vector<16xf32>
    %187 = vector.multi_reduction <add>, %186, %cst_69 [1] : vector<16x128xf32> to vector<16xf32>
    %188 = vector.shape_cast %187 : vector<16xf32> to vector<16x1xf32>
    %189 = math.log %188 : vector<16x1xf32>
    %190 = vector.broadcast %189 : vector<16x1xf32> to vector<16x128xf32>
    %191 = arith.subf %183, %190 : vector<16x128xf32>
    %cst_70 = arith.constant 0.000000e+00 : f32
    %192 = vector.broadcast %cst_70 : f32 to vector<16x128xf32>
    %193 = arith.select %177, %191, %192 : vector<16x128xi1>, vector<16x128xf32>
    %c0_71 = arith.constant 0 : index
    %c0_72 = arith.constant 0 : index
    %194 = vector.load %arg10[%c0_71, %c0_72] : memref<16x128xf32, #tpu.memory_space<vmem>>, vector<16x128xf32>
    tpu.vector_store %arg10[%c0_71, %c0_72], %193 {strides = array<i32>} : memref<16x128xf32, #tpu.memory_space<vmem>>, vector<16x128xf32>,
    return
  }
  func.func @transform_0(%arg0: i32) -> (i32, i32) {
    %c0_i32 = arith.constant 0 : i32
    %c0_i32_0 = arith.constant 0 : i32
    %c0_i32_1 = arith.constant 0 : i32
    return %c0_i32, %c0_i32_0 : i32, i32
  }
  func.func @transform_1(%arg0: i32) -> (i32, i32) {
    %c0_i32 = arith.constant 0 : i32
    %c0_i32_0 = arith.constant 0 : i32
    %c0_i32_1 = arith.constant 0 : i32
    return %c0_i32, %c0_i32_0 : i32, i32
  }
  func.func @transform_2(%arg0: i32) -> (i32, i32) {
    %c0_i32 = arith.constant 0 : i32
    %c0_i32_0 = arith.constant 0 : i32
    %c0_i32_1 = arith.constant 0 : i32
    return %c0_i32, %c0_i32_0 : i32, i32
  }
  func.func @transform_3(%arg0: i32) -> (i32, i32) {
    %c0_i32 = arith.constant 0 : i32
    %c0_i32_0 = arith.constant 0 : i32
    %c0_i32_1 = arith.constant 0 : i32
    return %c0_i32, %c0_i32_0 : i32, i32
  }
  func.func @transform_4(%arg0: i32) -> (i32, i32) {
    %c0_i32 = arith.constant 0 : i32
    %c0_i32_0 = arith.constant 0 : i32
    %c0_i32_1 = arith.constant 0 : i32
    return %c0_i32, %c0_i32_0 : i32, i32
  }
  func.func @transform_5(%arg0: i32) -> (i32, i32) {
    %c0_i32 = arith.constant 0 : i32
    %c0_i32_0 = arith.constant 0 : i32
    %c0_i32_1 = arith.constant 0 : i32
    return %c0_i32, %c0_i32_0 : i32, i32
  }
  func.func @transform_6(%arg0: i32) -> (i32, i32) {
    %c0_i32 = arith.constant 0 : i32
    %c0_i32_0 = arith.constant 0 : i32
    %c0_i32_1 = arith.constant 0 : i32
    return %c0_i32, %c0_i32_0 : i32, i32
  }
  func.func @transform_7(%arg0: i32) -> (i32, i32) {
    %c0_i32 = arith.constant 0 : i32
    %c0_i32_0 = arith.constant 0 : i32
    %c0_i32_1 = arith.constant 0 : i32
    return %c0_i32, %c0_i32_0 : i32, i32
  }
  func.func @transform_8(%arg0: i32) -> (i32, i32) {
    %c0_i32 = arith.constant 0 : i32
    %c0_i32_0 = arith.constant 0 : i32
    %c0_i32_1 = arith.constant 0 : i32
    return %c0_i32, %c0_i32_0 : i32, i32
  }
  func.func @transform_9(%arg0: i32) -> (i32, i32) {
    %c0_i32 = arith.constant 0 : i32
    %c0_i32_0 = arith.constant 0 : i32
    %c0_i32_1 = arith.constant 0 : i32
    return %c0_i32, %c0_i32_0 : i32, i32
  }
}

</mosaic_0001>

<llo_original>
// kernel: tpu_custom_call.1
$region0: #{tpu_custom_call.1}
  #allocation0 [shape = 'u32[]', space=smem, size = 0x4, offset = 0x4, fixed_abs, tag = 'smem constant byte address 0x4 - core index']
  #allocation1 [shape = 'u32[144,128]{1,0:T(1,128)}', space=vmem, size = 0x12000, scoped, tag = 'internal scratch']
  %s0 = inlined_call_operand.hbm [shape: bf16[16,64], index: 0, kind: input, shape index: {}]
  %s1 = inlined_call_operand.hbm [shape: f32[16,128], index: 1, kind: input, shape index: {}]
  %s2 = inlined_call_operand.hbm [shape: bf16[64,128], index: 2, kind: input, shape index: {}]
  %s3 = inlined_call_operand.hbm [shape: bf16[128,128], index: 3, kind: input, shape index: {}]
  %s4 = inlined_call_operand.vmem [shape: f32[2,128], index: 4, kind: input, shape index: {}]
  %s5 = inlined_call_operand.vmem [shape: f32[1,128], index: 5, kind: input, shape index: {}]
  %s6 = inlined_call_operand.hbm [shape: bf16[128,128], index: 6, kind: input, shape index: {}]
  %s7 = inlined_call_operand.hbm [shape: bf16[128,128], index: 7, kind: input, shape index: {}]
  %s8 = inlined_call_operand.vmem [shape: f32[1,128], index: 8, kind: input, shape index: {}]
  %s9 = inlined_call_operand.hbm [shape: f32[16,128], index: 9, kind: output, shape index: {}]
  %s10 = sld [smem:[#allocation0]]
  $region70: #{tpu_custom_call.1} parent=0
    _
  %s12 = ssub.s32 1, %s10
  %s13 = scalar_select 0, %s12, %s10
  $region1: #{tpu_custom_call.1} parent=0
    #allocation2 [shape = 'u8[4096]{0}', space=vmem, size = 0x1000, scoped, tag = 'input window, operand 0, single buffered']
    #allocation3 [shape = 's32[1]{0}', space=sflag, size = 0x4, scoped, tag = 'scoped memory for tpu_custom_call.1']
    #allocation4 [shape = 's32[1]{0}', space=sflag, size = 0x4, scoped, tag = 'scoped memory for tpu_custom_call.1']
    #allocation5 [shape = 'u8[8192]{0}', space=vmem, size = 0x2000, scoped, tag = 'input window, operand 1, single buffered']
    #allocation6 [shape = 's32[1]{0}', space=sflag, size = 0x4, scoped, tag = 'scoped memory for tpu_custom_call.1']
    #allocation7 [shape = 'u8[16384]{0}', space=vmem, size = 0x4000, scoped, tag = 'input window, operand 2, single buffered']
    #allocation8 [shape = 'u8[32768]{0}', space=vmem, size = 0x8000, scoped, tag = 'input window, operand 3, single buffered']
    #allocation9 [shape = 's32[1]{0}', space=sflag, size = 0x4, scoped, tag = 'scoped memory for tpu_custom_call.1']
    #allocation10 [shape = 'u8[32768]{0}', space=vmem, size = 0x8000, scoped, tag = 'input window, operand 6, single buffered']
    #allocation11 [shape = 'u8[32768]{0}', space=vmem, size = 0x8000, scoped, tag = 'input window, operand 7, single buffered']
    #allocation12 [shape = 's32[1]{0}', space=sflag, size = 0x4, scoped, tag = 'scoped memory for tpu_custom_call.1']
    #allocation13 [shape = 'u8[8192]{0}', space=vmem, size = 0x2000, scoped, tag = 'output window, operand 0, single buffered']
    %14 = vsyncpa [#allocation3], 0
    %15 = vsyncpa [#allocation6], 0
    %16 = vsyncpa [#allocation9], 0
    %17 = vsyncpa [#allocation12], 0
    %18 = vsyncpa [#allocation4], 0
    // Predicated region
    $region2: #{tpu_custom_call.1} parent=1 // pred_check
      _
    $region3: #{tpu_custom_call.1} parent=1 // pred_check_branch
      %20 = sbr.rel (0) target = $region5
    $region4: #{tpu_custom_call.1} parent=1 // pred_region
      %s22 = ssub.s32 128, 128
      %23 = vsyncadd [#allocation3], %s22
      %s24 = sshll.u32 [#allocation2], 4
      %s25 = int_to_ptr.vmem [resolvable:$true] %s24
      %30 = dma.hbm_to_vmem [thread:$0]  %s0, 128, %s25, [#allocation3], 64, 64, 4
    $region5: #{tpu_custom_call.1} parent=1 // pred_fallthru
      _
    // Predicated region
    $region6: #{tpu_custom_call.1} parent=1 // pred_check
      _
    $region7: #{tpu_custom_call.1} parent=1 // pred_check_branch
      %32 = sbr.rel (0) target = $region9
    $region8: #{tpu_custom_call.1} parent=1 // pred_region
      %s34 = ssub.s32 256, 256
      %35 = vsyncadd [#allocation6], %s34
      %s36 = sshll.u32 [#allocation5], 4
      %s37 = int_to_ptr.vmem [resolvable:$true] %s36
      %42 = dma.hbm_to_vmem [thread:$0]  %s1, 256, %s37, [#allocation6], 128, 128, 8
    $region9: #{tpu_custom_call.1} parent=1 // pred_fallthru
      _
    // Predicated region
    $region10: #{tpu_custom_call.1} parent=1 // pred_check
      _
    $region11: #{tpu_custom_call.1} parent=1 // pred_check_branch
      %44 = sbr.rel (0) target = $region13
    $region12: #{tpu_custom_call.1} parent=1 // pred_region
      %s46 = ssub.s32 512, 512
      %47 = vsyncadd [#allocation6], %s46
      %s48 = sshll.u32 [#allocation7], 4
      %s49 = int_to_ptr.vmem [resolvable:$true] %s48
      %54 = dma.hbm_to_vmem [thread:$0]  %s2, 512, %s49, [#allocation6], 64, 64, 4
    $region13: #{tpu_custom_call.1} parent=1 // pred_fallthru
      _
    // Predicated region
    $region14: #{tpu_custom_call.1} parent=1 // pred_check
      _
    $region15: #{tpu_custom_call.1} parent=1 // pred_check_branch
      %56 = sbr.rel (0) target = $region17
    $region16: #{tpu_custom_call.1} parent=1 // pred_region
      %s58 = ssub.s32 1024, 1024
      %59 = vsyncadd [#allocation9], %s58
      %s60 = sshll.u32 [#allocation8], 4
      %s61 = int_to_ptr.vmem [resolvable:$true] %s60
      %66 = dma.hbm_to_vmem [thread:$0]  %s3, 1024, %s61, [#allocation9], 64, 64, 4
    $region17: #{tpu_custom_call.1} parent=1 // pred_fallthru
      _
    // Predicated region
    $region18: #{tpu_custom_call.1} parent=1 // pred_check
      _
    $region19: #{tpu_custom_call.1} parent=1 // pred_check_branch
      %68 = sbr.rel (0) target = $region21
    $region20: #{tpu_custom_call.1} parent=1 // pred_region
      _
    $region21: #{tpu_custom_call.1} parent=1 // pred_fallthru
      _
    // Predicated region
    $region22: #{tpu_custom_call.1} parent=1 // pred_check
      _
    $region23: #{tpu_custom_call.1} parent=1 // pred_check_branch
      %70 = sbr.rel (0) target = $region25
    $region24: #{tpu_custom_call.1} parent=1 // pred_region
      _
    $region25: #{tpu_custom_call.1} parent=1 // pred_fallthru
      _
    // Predicated region
    $region26: #{tpu_custom_call.1} parent=1 // pred_check
      _
    $region27: #{tpu_custom_call.1} parent=1 // pred_check_branch
      %72 = sbr.rel (0) target = $region29
    $region28: #{tpu_custom_call.1} parent=1 // pred_region
      %s74 = ssub.s32 1024, 1024
      %75 = vsyncadd [#allocation9], %s74
      %s76 = sshll.u32 [#allocation10], 4
      %s77 = int_to_ptr.vmem [resolvable:$true] %s76
      %82 = dma.hbm_to_vmem [thread:$0]  %s6, 1024, %s77, [#allocation9], 64, 64, 4
    $region29: #{tpu_custom_call.1} parent=1 // pred_fallthru
      _
    // Predicated region
    $region30: #{tpu_custom_call.1} parent=1 // pred_check
      _
    $region31: #{tpu_custom_call.1} parent=1 // pred_check_branch
      %84 = sbr.rel (0) target = $region33
    $region32: #{tpu_custom_call.1} parent=1 // pred_region
      %s86 = ssub.s32 1024, 1024
      %87 = vsyncadd [#allocation12], %s86
      %s88 = sshll.u32 [#allocation11], 4
      %s89 = int_to_ptr.vmem [resolvable:$true] %s88
      %94 = dma.hbm_to_vmem [thread:$0]  %s7, 1024, %s89, [#allocation12], 64, 64, 4
    $region33: #{tpu_custom_call.1} parent=1 // pred_fallthru
      _
    // Predicated region
    $region34: #{tpu_custom_call.1} parent=1 // pred_check
      _
    $region35: #{tpu_custom_call.1} parent=1 // pred_check_branch
      %96 = sbr.rel (0) target = $region37
    $region36: #{tpu_custom_call.1} parent=1 // pred_region
      _
    $region37: #{tpu_custom_call.1} parent=1 // pred_fallthru
      _
    // Predicated region
    $region38: #{tpu_custom_call.1} parent=1 // pred_check
      _
    $region39: #{tpu_custom_call.1} parent=1 // pred_check_branch
      %98 = sbr.rel (0) target = $region41
    $region40: #{tpu_custom_call.1} parent=1 // pred_region
      %99 = dma.done [#allocation3], 128
    $region41: #{tpu_custom_call.1} parent=1 // pred_fallthru
      _
    // Predicated region
    $region42: #{tpu_custom_call.1} parent=1 // pred_check
      _
    $region43: #{tpu_custom_call.1} parent=1 // pred_check_branch
      %101 = sbr.rel (0) target = $region45
    $region44: #{tpu_custom_call.1} parent=1 // pred_region
      %102 = dma.done [#allocation6], 256
    $region45: #{tpu_custom_call.1} parent=1 // pred_fallthru
      _
    // Predicated region
    $region46: #{tpu_custom_call.1} parent=1 // pred_check
      _
    $region47: #{tpu_custom_call.1} parent=1 // pred_check_branch
      %104 = sbr.rel (0) target = $region49
    $region48: #{tpu_custom_call.1} parent=1 // pred_region
      %105 = dma.done [#allocation6], 512
    $region49: #{tpu_custom_call.1} parent=1 // pred_fallthru
      _
    // Predicated region
    $region50: #{tpu_custom_call.1} parent=1 // pred_check
      _
    $region51: #{tpu_custom_call.1} parent=1 // pred_check_branch
      %107 = sbr.rel (0) target = $region53
    $region52: #{tpu_custom_call.1} parent=1 // pred_region
      %108 = dma.done [#allocation9], 1024
    $region53: #{tpu_custom_call.1} parent=1 // pred_fallthru
      _
    // Predicated region
    $region54: #{tpu_custom_call.1} parent=1 // pred_check
      _
    $region55: #{tpu_custom_call.1} parent=1 // pred_check_branch
      %110 = sbr.rel (0) target = $region57
    $region56: #{tpu_custom_call.1} parent=1 // pred_region
      %111 = dma.done [#allocation9], 1024
    $region57: #{tpu_custom_call.1} parent=1 // pred_fallthru
      _
    // Predicated region
    $region58: #{tpu_custom_call.1} parent=1 // pred_check
      _
    $region59: #{tpu_custom_call.1} parent=1 // pred_check_branch
      %113 = sbr.rel (0) target = $region61
    $region60: #{tpu_custom_call.1} parent=1 // pred_region
      %114 = dma.done [#allocation12], 1024
    $region61: #{tpu_custom_call.1} parent=1 // pred_fallthru
      _
    %v116 = vld [vmem:[#allocation5] sm:$0xff]
    %v117 = vld [vmem:[#allocation5 + $0x8] sm:$0xff]
    %vm118 = vcmp.gt.f32.partialorder %v116, 0.0
    %vm119 = vcmp.gt.f32.partialorder %v117, 0.0
    %120 = vadd.xlane.f32.xlu0 %v116
    %v121 = vpop.xlane.xlu0 %120
    %122 = vadd.xlane.f32.xlu0 %v117
    %v123 = vpop.xlane.xlu0 %122
    %v124 = vadd.f32 %v116, %v117
    %v125 = vrot.slane %v124, 4
    %v126 = vadd.f32 %v124, %v125
    %v127 = vrot.slane %v126, 2
    %v128 = vadd.f32 %v126, %v127
    %v129 = vrot.slane %v128, 1
    %v130 = vadd.f32 %v128, %v129
    %vm131 = vcmp.gt.f32.partialorder %v121, 0.0
    %vm132 = vcmp.gt.f32.partialorder %v123, 0.0
    %v133 = vrcp.pop %v121
    %v134 = vrcp.pop %v123
    %v135 = vsel %vm131, %v133, 0.0
    %v136 = vsel %vm132, %v134, 0.0
    %vm137 = vcmp.gt.f32.partialorder %v130, 0.0
    %v138 = vrcp.pop %v130
    %v139 = vsel %vm137, %v138, 0.0
    %v140 = vld [vmem:[#allocation2] sm:$0xf]
    %v141 = vld [vmem:[#allocation2 + $0x4] sm:$0xf]
    %v142 = vld [vmem:[#allocation7] sm:$0xf]
    %v143 = vld [vmem:[#allocation7 + $0x4] sm:$0xf]
    %v144 = vld [vmem:[#allocation7 + $0x8] sm:$0xf]
    %v145 = vld [vmem:[#allocation7 + $0xc] sm:$0xf]
    %v146 = vld [vmem:[#allocation7 + $0x10] sm:$0xf]
    %v147 = vld [vmem:[#allocation7 + $0x14] sm:$0xf]
    %v148 = vld [vmem:[#allocation7 + $0x18] sm:$0xf]
    %v149 = vld [vmem:[#allocation7 + $0x1c] sm:$0xf]
    %v150 = vld [vmem:[#allocation8] sm:$0xf]
    %v151 = vld [vmem:[#allocation8 + $0x4] sm:$0xf]
    %v152 = vld [vmem:[#allocation8 + $0x8] sm:$0xf]
    %v153 = vld [vmem:[#allocation8 + $0xc] sm:$0xf]
    %v154 = vld [vmem:[#allocation8 + $0x10] sm:$0xf]
    %v155 = vld [vmem:[#allocation8 + $0x14] sm:$0xf]
    %v156 = vld [vmem:[#allocation8 + $0x18] sm:$0xf]
    %v157 = vld [vmem:[#allocation8 + $0x1c] sm:$0xf]
    %v158 = vld [vmem:[#allocation8 + $0x20] sm:$0xf]
    %v159 = vld [vmem:[#allocation8 + $0x24] sm:$0xf]
    %v160 = vld [vmem:[#allocation8 + $0x28] sm:$0xf]
    %v161 = vld [vmem:[#allocation8 + $0x2c] sm:$0xf]
    %v162 = vld [vmem:[#allocation8 + $0x30] sm:$0xf]
    %v163 = vld [vmem:[#allocation8 + $0x34] sm:$0xf]
    %v164 = vld [vmem:[#allocation8 + $0x38] sm:$0xf]
    %v165 = vld [vmem:[#allocation8 + $0x3c] sm:$0xf]
    %v166 = vld [vmem:[%s4] sm:$0x3]
    %v167 = vld [vmem:[%s5] sm:$0x1]
    %v170 = vunpack.c.l.b16 %v140
    %v171 = vunpack.c.l.b16 %v141
    %v172 = vpack.c.b16 %v171, %v170
    %v181 = vunpack.c.l.b16 %v142
    %v182 = vunpack.c.l.b16 %v143
    %v183 = vunpack.c.l.b16 %v144
    %v184 = vunpack.c.l.b16 %v145
    %v185 = vunpack.c.l.b16 %v146
    %v186 = vunpack.c.l.b16 %v147
    %v187 = vunpack.c.l.b16 %v148
    %v188 = vunpack.c.l.b16 %v149
    %v189 = vpack.c.b16 %v182, %v181
    %v190 = vpack.c.b16 %v184, %v183
    %v191 = vpack.c.b16 %v186, %v185
    %v192 = vpack.c.b16 %v188, %v187
    %vm197 = vcmask 523264
    %v199 = vsel %vm197, %v172, 0
    %201 = vmatprep.subr.bf16.mxu0 0
    %202 = vmatpush1.bf16.msra.mxu0 %v189
    %203 = vmatprep.subr.bf16.mxu0 0
    %204 = vmatpush1.bf16.msra.mxu0 %v190
    %205 = vmatprep.subr.bf16.mxu0 0
    %206 = vmatpush1.bf16.msra.mxu0 %v191
    %207 = vmatprep.subr.bf16.mxu0 0
    %208 = vmatpush1.bf16.msra.mxu0 %v192
    %209 = vmatprep.subr.bf16.mxu0 0
    %210 = vmatpush1.bf16.msra.mxu0 0
    %211 = vmatprep.subr.bf16.mxu0 0
    %212 = vmatpush1.bf16.msra.mxu0 0
    %213 = vmatprep.subr.bf16.mxu0 0
    %214 = vmatpush1.bf16.msra.mxu0 0
    %215 = vmatprep.subr.bf16.mxu0 0
    %216 = vmatpush1.bf16.msra.mxu0 0
    %217 = vmatprep.subr.bf16.mxu0 0
    %218 = vmatpush1.bf16.msra.mxu0 0
    %219 = vmatprep.subr.bf16.mxu0 0
    %220 = vmatpush1.bf16.msra.mxu0 0
    %221 = vmatprep.subr.bf16.mxu0 0
    %222 = vmatpush1.bf16.msra.mxu0 0
    %223 = vmatprep.subr.bf16.mxu0 0
    %224 = vmatpush1.bf16.msra.mxu0 0
    %225 = vmatprep.subr.bf16.mxu0 0
    %226 = vmatpush1.bf16.msra.mxu0 0
    %227 = vmatprep.subr.bf16.mxu0 0
    %228 = vmatpush1.bf16.msra.mxu0 0
    %229 = vmatprep.subr.bf16.mxu0 0
    %230 = vmatpush1.bf16.msra.mxu0 0
    %231 = vmatprep.subr.bf16.mxu0 0
    %232 = vmatpush1.bf16.msra.mxu0 0
    %233 = vmatprep.mubr.bf16.mxu0 0
    %234 = vmatmul.mubr.bf16.gmra.mrb[0].mxu0 %v199
    %v235 = vpop.f32.mrb[0].mxu0
    %v236 = vadd.f32 0.0, %v235
    %v237 = vpop.f32.mrb[0].mxu0
    %v238 = vpop.f32.mrb[0].mxu0
    %v239 = vadd.f32 0.0, %v238
    %v240 = vpop.f32.mrb[0].mxu0
    %241 = vdwg.mxu0
    %v242 = vpack.c.bf16 %v239, %v236
    %v259 = vunpack.c.l.b16 %v150
    %v260 = vunpack.c.l.b16 %v151
    %v261 = vunpack.c.l.b16 %v152
    %v262 = vunpack.c.l.b16 %v153
    %v263 = vunpack.c.l.b16 %v154
    %v264 = vunpack.c.l.b16 %v155
    %v265 = vunpack.c.l.b16 %v156
    %v266 = vunpack.c.l.b16 %v157
    %v267 = vunpack.c.l.b16 %v158
    %v268 = vunpack.c.l.b16 %v159
    %v269 = vunpack.c.l.b16 %v160
    %v270 = vunpack.c.l.b16 %v161
    %v271 = vunpack.c.l.b16 %v162
    %v272 = vunpack.c.l.b16 %v163
    %v273 = vunpack.c.l.b16 %v164
    %v274 = vunpack.c.l.b16 %v165
    %v275 = vpack.c.b16 %v260, %v259
    %v276 = vpack.c.b16 %v262, %v261
    %v277 = vpack.c.b16 %v264, %v263
    %v278 = vpack.c.b16 %v266, %v265
    %v279 = vpack.c.b16 %v268, %v267
    %v280 = vpack.c.b16 %v270, %v269
    %v281 = vpack.c.b16 %v272, %v271
    %v282 = vpack.c.b16 %v274, %v273
    %291 = vmatprep.subr.bf16.mxu0 0
    %292 = vmatpush1.bf16.msra.mxu0 %v275
    %293 = vmatprep.subr.bf16.mxu0 0
    %294 = vmatpush1.bf16.msra.mxu0 %v276
    %295 = vmatprep.subr.bf16.mxu0 0
    %296 = vmatpush1.bf16.msra.mxu0 %v277
    %297 = vmatprep.subr.bf16.mxu0 0
    %298 = vmatpush1.bf16.msra.mxu0 %v278
    %299 = vmatprep.subr.bf16.mxu0 0
    %300 = vmatpush1.bf16.msra.mxu0 %v279
    %301 = vmatprep.subr.bf16.mxu0 0
    %302 = vmatpush1.bf16.msra.mxu0 %v280
    %303 = vmatprep.subr.bf16.mxu0 0
    %304 = vmatpush1.bf16.msra.mxu0 %v281
    %305 = vmatprep.subr.bf16.mxu0 0
    %306 = vmatpush1.bf16.msra.mxu0 %v282
    %307 = vmatprep.subr.bf16.mxu0 0
    %308 = vmatpush1.bf16.msra.mxu0 0
    %309 = vmatprep.subr.bf16.mxu0 0
    %310 = vmatpush1.bf16.msra.mxu0 0
    %311 = vmatprep.subr.bf16.mxu0 0
    %312 = vmatpush1.bf16.msra.mxu0 0
    %313 = vmatprep.subr.bf16.mxu0 0
    %314 = vmatpush1.bf16.msra.mxu0 0
    %315 = vmatprep.subr.bf16.mxu0 0
    %316 = vmatpush1.bf16.msra.mxu0 0
    %317 = vmatprep.subr.bf16.mxu0 0
    %318 = vmatpush1.bf16.msra.mxu0 0
    %319 = vmatprep.subr.bf16.mxu0 0
    %320 = vmatpush1.bf16.msra.mxu0 0
    %321 = vmatprep.subr.bf16.mxu0 0
    %322 = vmatpush1.bf16.msra.mxu0 0
    %323 = vmatprep.mubr.bf16.mxu0 0
    %324 = vmatmul.mubr.bf16.gmra.mrb[0].mxu0 %v242
    %v325 = vpop.f32.mrb[0].mxu0
    %v326 = vadd.f32 0.0, %v325
    %v327 = vpop.f32.mrb[0].mxu0
    %v328 = vpop.f32.mrb[0].mxu0
    %v329 = vadd.f32 0.0, %v328
    %v330 = vpop.f32.mrb[0].mxu0
    %331 = vdwg.mxu0
    %333 = vset.pattern.permute.xlu0 2
    %334 = vperm.xlu0 %333, %v326
    %v335 = vpop.permute.xlu0 %334
    %338 = vset.pattern.permute.xlu0 2
    %339 = vperm.xlu0 %338, %v329
    %v340 = vpop.permute.xlu0 %339
    %v342 = vmul.f32 %v116, %v335
    %v343 = vmul.f32 %v117, %v340
    %v344 = vadd.f32 %v342, %v343
    %v345 = vrot.slane %v344, 4
    %v346 = vadd.f32 %v344, %v345
    %v347 = vrot.slane %v346, 2
    %v348 = vadd.f32 %v346, %v347
    %v349 = vrot.slane %v348, 1
    %v350 = vadd.f32 %v348, %v349
    %351 = vset.pattern.permute.xlu0 0
    %352 = vperm.xlu0 %351, %v326
    %v353 = vpop.permute.xlu0 %352
    %355 = vset.pattern.permute.xlu0 0
    %356 = vperm.xlu0 %355, %v329
    %v357 = vpop.permute.xlu0 %356
    %v359 = vadd.f32 %v353, %v350
    %v360 = vadd.f32 %v357, %v350
    %v361 = vmul.f32 %v359, 0.2
    %v362 = vmul.f32 %v360, 0.2
    %v363 = vmax.f32 %v359, %v361
    %v364 = vmax.f32 %v360, %v362
    %v365 = vsel %vm118, %v363, -1e+30
    %v366 = vsel %vm119, %v364, -1e+30
    %367 = vmax.xlane.f32.xlu0 %v365
    %v368 = vpop.xlane.xlu0 %367
    %369 = vmax.xlane.f32.xlu0 %v366
    %v370 = vpop.xlane.xlu0 %369
    %v371 = vsel %vm131, %v368, 0.0
    %v372 = vsel %vm132, %v370, 0.0
    %v373 = vsub.f32 %v363, %v371
    %v374 = vsub.f32 %v364, %v372
    %v375 = vmul.f32 %v373, 1.442695
    %v376 = vpow.pop %v375
    %v377 = vmul.f32 %v374, 1.442695
    %v378 = vpow.pop %v377
    %v379 = vsel %vm118, %v376, 0.0
    %v380 = vsel %vm119, %v378, 0.0
    %381 = vadd.xlane.f32.xlu0 %v379
    %v382 = vpop.xlane.xlu0 %381
    %383 = vadd.xlane.f32.xlu0 %v380
    %v384 = vpop.xlane.xlu0 %383
    %vm385 = vcmp.gt.f32.partialorder %v382, 0.0
    %vm386 = vcmp.gt.f32.partialorder %v384, 0.0
    %v387 = vrcp.pop %v382
    %v388 = vmul.f32 1.0, %v387
    %v389 = vrcp.pop %v384
    %v390 = vmul.f32 1.0, %v389
    %v391 = vsel %vm385, %v388, 0.0
    %v392 = vsel %vm386, %v390, 0.0
    %v393 = vmul.f32 %v379, %v391
    %v394 = vmul.f32 %v380, %v392
    %v395 = vpack.c.bf16 %v394, %v393
    %v396 = vlaneseq
    %v397 = vshrl.u32 %v396, 7
    %v398 = vsub.s32 0, %v397
    %v399 = vrot.slane %v166, %v398
    %v400 = vmul.f32 %v236, %v399
    %v401 = vmul.f32 %v239, %v399
    %v402 = vpack.c.bf16 %v401, %v400
    %v403 = vmul.f32 %v393, %v139
    %v404 = vmul.f32 %v394, %v139
    %v405 = vpack.c.bf16 %v404, %v403
    %406 = vxpose.xlu0.c.b16.start [1/8] %v405, 128
    %407 = vxpose.xlu0.c.b16.cont [2/8] 0, 128
    %408 = vxpose.xlu0.c.b16.cont [3/8] 0, 128
    %409 = vxpose.xlu0.c.b16.cont [4/8] 0, 128
    %410 = vxpose.xlu0.c.b16.cont [5/8] 0, 128
    %411 = vxpose.xlu0.c.b16.cont [6/8] 0, 128
    %412 = vxpose.xlu0.c.b16.cont [7/8] 0, 128
    %413 = vxpose.xlu0.c.b16.end [8/8] 0, 128
    %v414 = vpop.trf.xlu0
    %v415 = vpop.trf.xlu0
    %v416 = vpop.trf.xlu0
    %v417 = vpop.trf.xlu0
    %v418 = vpop.trf.xlu0
    %v419 = vpop.trf.xlu0
    %v420 = vpop.trf.xlu0
    %v421 = vpop.trf.xlu0
    %vm422 = vcmask 130048
    %v424 = vsel %vm422, %v414, 0
    %v427 = vsel %vm422, %v415, 0
    %v430 = vsel %vm422, %v416, 0
    %v433 = vsel %vm422, %v417, 0
    %v436 = vsel %vm422, %v418, 0
    %v439 = vsel %vm422, %v419, 0
    %v442 = vsel %vm422, %v420, 0
    %v445 = vsel %vm422, %v421, 0
    %447 = vmatprep.subr.bf16.mxu0 0
    %448 = vmatpush1.bf16.msra.mxu0 %v402
    %449 = vmatprep.subr.bf16.mxu0 0
    %450 = vmatpush1.bf16.msra.mxu0 0
    %451 = vmatprep.subr.bf16.mxu0 0
    %452 = vmatpush1.bf16.msra.mxu0 0
    %453 = vmatprep.subr.bf16.mxu0 0
    %454 = vmatpush1.bf16.msra.mxu0 0
    %455 = vmatprep.subr.bf16.mxu0 0
    %456 = vmatpush1.bf16.msra.mxu0 0
    %457 = vmatprep.subr.bf16.mxu0 0
    %458 = vmatpush1.bf16.msra.mxu0 0
    %459 = vmatprep.subr.bf16.mxu0 0
    %460 = vmatpush1.bf16.msra.mxu0 0
    %461 = vmatprep.subr.bf16.mxu0 0
    %462 = vmatpush1.bf16.msra.mxu0 0
    %463 = vmatprep.subr.bf16.mxu0 0
    %464 = vmatpush1.bf16.msra.mxu0 0
    %465 = vmatprep.subr.bf16.mxu0 0
    %466 = vmatpush1.bf16.msra.mxu0 0
    %467 = vmatprep.subr.bf16.mxu0 0
    %468 = vmatpush1.bf16.msra.mxu0 0
    %469 = vmatprep.subr.bf16.mxu0 0
    %470 = vmatpush1.bf16.msra.mxu0 0
    %471 = vmatprep.subr.bf16.mxu0 0
    %472 = vmatpush1.bf16.msra.mxu0 0
    %473 = vmatprep.subr.bf16.mxu0 0
    %474 = vmatpush1.bf16.msra.mxu0 0
    %475 = vmatprep.subr.bf16.mxu0 0
    %476 = vmatpush1.bf16.msra.mxu0 0
    %477 = vmatprep.subr.bf16.mxu0 0
    %478 = vmatpush1.bf16.msra.mxu0 0
    %479 = vmatprep.mubr.bf16.mxu0 0
    %480 = vmatmul.mubr.bf16.gmra.mrb[0].mxu0 %v424
    %v481 = vpop.f32.mrb[0].mxu0
    %v482 = vadd.f32 0.0, %v481
    %v483 = vpop.f32.mrb[0].mxu0
    %v484 = vpop.f32.mrb[0].mxu0
    %v485 = vadd.f32 0.0, %v484
    %v486 = vpop.f32.mrb[0].mxu0
    %487 = vmatprep.mubr.bf16.mxu0 0
    %488 = vmatmul.mubr.bf16.gmra.mrb[0].mxu0 %v427
    %v489 = vpop.f32.mrb[0].mxu0
    %v490 = vadd.f32 0.0, %v489
    %v491 = vpop.f32.mrb[0].mxu0
    %v492 = vpop.f32.mrb[0].mxu0
    %v493 = vadd.f32 0.0, %v492
    %v494 = vpop.f32.mrb[0].mxu0
    %495 = vmatprep.mubr.bf16.mxu0 0
    %496 = vmatmul.mubr.bf16.gmra.mrb[0].mxu0 %v430
    %v497 = vpop.f32.mrb[0].mxu0
    %v498 = vadd.f32 0.0, %v497
    %v499 = vpop.f32.mrb[0].mxu0
    %v500 = vpop.f32.mrb[0].mxu0
    %v501 = vadd.f32 0.0, %v500
    %v502 = vpop.f32.mrb[0].mxu0
    %503 = vmatprep.mubr.bf16.mxu0 0
    %504 = vmatmul.mubr.bf16.gmra.mrb[0].mxu0 %v433
    %v505 = vpop.f32.mrb[0].mxu0
    %v506 = vadd.f32 0.0, %v505
    %v507 = vpop.f32.mrb[0].mxu0
    %v508 = vpop.f32.mrb[0].mxu0
    %v509 = vadd.f32 0.0, %v508
    %v510 = vpop.f32.mrb[0].mxu0
    %511 = vmatprep.mubr.bf16.mxu0 0
    %512 = vmatmul.mubr.bf16.gmra.mrb[0].mxu0 %v436
    %v513 = vpop.f32.mrb[0].mxu0
    %v514 = vadd.f32 0.0, %v513
    %v515 = vpop.f32.mrb[0].mxu0
    %v516 = vpop.f32.mrb[0].mxu0
    %v517 = vadd.f32 0.0, %v516
    %v518 = vpop.f32.mrb[0].mxu0
    %519 = vmatprep.mubr.bf16.mxu0 0
    %520 = vmatmul.mubr.bf16.gmra.mrb[0].mxu0 %v439
    %v521 = vpop.f32.mrb[0].mxu0
    %v522 = vadd.f32 0.0, %v521
    %v523 = vpop.f32.mrb[0].mxu0
    %v524 = vpop.f32.mrb[0].mxu0
    %v525 = vadd.f32 0.0, %v524
    %v526 = vpop.f32.mrb[0].mxu0
    %527 = vmatprep.mubr.bf16.mxu0 0
    %528 = vmatmul.mubr.bf16.gmra.mrb[0].mxu0 %v442
    %v529 = vpop.f32.mrb[0].mxu0
    %v530 = vadd.f32 0.0, %v529
    %v531 = vpop.f32.mrb[0].mxu0
    %v532 = vpop.f32.mrb[0].mxu0
    %v533 = vadd.f32 0.0, %v532
    %v534 = vpop.f32.mrb[0].mxu0
    %535 = vmatprep.mubr.bf16.mxu0 0
    %536 = vmatmul.mubr.bf16.gmra.mrb[0].mxu0 %v445
    %v537 = vpop.f32.mrb[0].mxu0
    %v538 = vadd.f32 0.0, %v537
    %v539 = vpop.f32.mrb[0].mxu0
    %v540 = vpop.f32.mrb[0].mxu0
    %v541 = vadd.f32 0.0, %v540
    %v542 = vpop.f32.mrb[0].mxu0
    %543 = vdwg.mxu0
    %v544 = vpack.c.bf16 %v485, %v482
    %v545 = vpack.c.bf16 %v493, %v490
    %v546 = vpack.c.bf16 %v501, %v498
    %v547 = vpack.c.bf16 %v509, %v506
    %v548 = vpack.c.bf16 %v517, %v514
    %v549 = vpack.c.bf16 %v525, %v522
    %v550 = vpack.c.bf16 %v533, %v530
    %v551 = vpack.c.bf16 %v541, %v538
    %552 = vset.pattern.permute.xlu0 3
    %553 = vperm.xlu0 %552, %v326
    %v554 = vpop.permute.xlu0 %553
    %556 = vset.pattern.permute.xlu0 3
    %557 = vperm.xlu0 %556, %v329
    %v558 = vpop.permute.xlu0 %557
    %v560 = vmul.f32 %v116, %v554
    %v561 = vmul.f32 %v117, %v558
    %v562 = vadd.f32 %v560, %v561
    %v563 = vrot.slane %v562, 4
    %v564 = vadd.f32 %v562, %v563
    %v565 = vrot.slane %v564, 2
    %v566 = vadd.f32 %v564, %v565
    %v567 = vrot.slane %v566, 1
    %v568 = vadd.f32 %v566, %v567
    %569 = vset.pattern.permute.xlu0 1
    %570 = vperm.xlu0 %569, %v326
    %v571 = vpop.permute.xlu0 %570
    %573 = vset.pattern.permute.xlu0 1
    %574 = vperm.xlu0 %573, %v329
    %v575 = vpop.permute.xlu0 %574
    %v577 = vadd.f32 %v571, %v568
    %v578 = vadd.f32 %v575, %v568
    %v579 = vmul.f32 %v577, 0.2
    %v580 = vmul.f32 %v578, 0.2
    %v581 = vmax.f32 %v577, %v579
    %v582 = vmax.f32 %v578, %v580
    %v583 = vsel %vm118, %v581, -1e+30
    %v584 = vsel %vm119, %v582, -1e+30
    %585 = vmax.xlane.f32.xlu0 %v583
    %v586 = vpop.xlane.xlu0 %585
    %587 = vmax.xlane.f32.xlu0 %v584
    %v588 = vpop.xlane.xlu0 %587
    %v589 = vsel %vm131, %v586, 0.0
    %v590 = vsel %vm132, %v588, 0.0
    %v591 = vsub.f32 %v581, %v589
    %v592 = vsub.f32 %v582, %v590
    %v593 = vmul.f32 %v591, 1.442695
    %v594 = vpow.pop %v593
    %v595 = vmul.f32 %v592, 1.442695
    %v596 = vpow.pop %v595
    %v597 = vsel %vm118, %v594, 0.0
    %v598 = vsel %vm119, %v596, 0.0
    %599 = vadd.xlane.f32.xlu0 %v597
    %v600 = vpop.xlane.xlu0 %599
    %601 = vadd.xlane.f32.xlu0 %v598
    %v602 = vpop.xlane.xlu0 %601
    %vm603 = vcmp.gt.f32.partialorder %v600, 0.0
    %vm604 = vcmp.gt.f32.partialorder %v602, 0.0
    %v605 = vrcp.pop %v600
    %v606 = vmul.f32 1.0, %v605
    %v607 = vrcp.pop %v602
    %v608 = vmul.f32 1.0, %v607
    %v609 = vsel %vm603, %v606, 0.0
    %v610 = vsel %vm604, %v608, 0.0
    %v611 = vmul.f32 %v597, %v609
    %v612 = vmul.f32 %v598, %v610
    %v613 = vpack.c.bf16 %v612, %v611
    %v614 = vlaneseq
    %v615 = vshrl.u32 %v614, 7
    %v616 = vsub.s32 1, %v615
    %v617 = vrot.slane %v166, %v616
    %v618 = vmul.f32 %v236, %v617
    %v619 = vmul.f32 %v239, %v617
    %v620 = vpack.c.bf16 %v619, %v618
    %v621 = vmul.f32 %v611, %v139
    %v622 = vmul.f32 %v612, %v139
    %v623 = vpack.c.bf16 %v622, %v621
    %624 = vxpose.xlu0.c.b16.start [1/8] %v623, 128
    %625 = vxpose.xlu0.c.b16.cont [2/8] 0, 128
    %626 = vxpose.xlu0.c.b16.cont [3/8] 0, 128
    %627 = vxpose.xlu0.c.b16.cont [4/8] 0, 128
    %628 = vxpose.xlu0.c.b16.cont [5/8] 0, 128
    %629 = vxpose.xlu0.c.b16.cont [6/8] 0, 128
    %630 = vxpose.xlu0.c.b16.cont [7/8] 0, 128
    %631 = vxpose.xlu0.c.b16.end [8/8] 0, 128
    %v632 = vpop.trf.xlu0
    %v633 = vpop.trf.xlu0
    %v634 = vpop.trf.xlu0
    %v635 = vpop.trf.xlu0
    %v636 = vpop.trf.xlu0
    %v637 = vpop.trf.xlu0
    %v638 = vpop.trf.xlu0
    %v639 = vpop.trf.xlu0
    %v641 = vsel %vm422, %v632, 0
    %v644 = vsel %vm422, %v633, 0
    %v647 = vsel %vm422, %v634, 0
    %v650 = vsel %vm422, %v635, 0
    %v653 = vsel %vm422, %v636, 0
    %v656 = vsel %vm422, %v637, 0
    %v659 = vsel %vm422, %v638, 0
    %v662 = vsel %vm422, %v639, 0
    %664 = vmatprep.subr.bf16.mxu0 0
    %665 = vmatpush1.bf16.msra.mxu0 %v620
    %666 = vmatprep.subr.bf16.mxu0 0
    %667 = vmatpush1.bf16.msra.mxu0 0
    %668 = vmatprep.subr.bf16.mxu0 0
    %669 = vmatpush1.bf16.msra.mxu0 0
    %670 = vmatprep.subr.bf16.mxu0 0
    %671 = vmatpush1.bf16.msra.mxu0 0
    %672 = vmatprep.subr.bf16.mxu0 0
    %673 = vmatpush1.bf16.msra.mxu0 0
    %674 = vmatprep.subr.bf16.mxu0 0
    %675 = vmatpush1.bf16.msra.mxu0 0
    %676 = vmatprep.subr.bf16.mxu0 0
    %677 = vmatpush1.bf16.msra.mxu0 0
    %678 = vmatprep.subr.bf16.mxu0 0
    %679 = vmatpush1.bf16.msra.mxu0 0
    %680 = vmatprep.subr.bf16.mxu0 0
    %681 = vmatpush1.bf16.msra.mxu0 0
    %682 = vmatprep.subr.bf16.mxu0 0
    %683 = vmatpush1.bf16.msra.mxu0 0
    %684 = vmatprep.subr.bf16.mxu0 0
    %685 = vmatpush1.bf16.msra.mxu0 0
    %686 = vmatprep.subr.bf16.mxu0 0
    %687 = vmatpush1.bf16.msra.mxu0 0
    %688 = vmatprep.subr.bf16.mxu0 0
    %689 = vmatpush1.bf16.msra.mxu0 0
    %690 = vmatprep.subr.bf16.mxu0 0
    %691 = vmatpush1.bf16.msra.mxu0 0
    %692 = vmatprep.subr.bf16.mxu0 0
    %693 = vmatpush1.bf16.msra.mxu0 0
    %694 = vmatprep.subr.bf16.mxu0 0
    %695 = vmatpush1.bf16.msra.mxu0 0
    %696 = vmatprep.mubr.bf16.mxu0 0
    %697 = vmatmul.mubr.bf16.gmra.mrb[0].mxu0 %v641
    %v698 = vpop.f32.mrb[0].mxu0
    %v699 = vadd.f32 0.0, %v698
    %v700 = vpop.f32.mrb[0].mxu0
    %v701 = vpop.f32.mrb[0].mxu0
    %v702 = vadd.f32 0.0, %v701
    %v703 = vpop.f32.mrb[0].mxu0
    %704 = vmatprep.mubr.bf16.mxu0 0
    %705 = vmatmul.mubr.bf16.gmra.mrb[0].mxu0 %v644
    %v706 = vpop.f32.mrb[0].mxu0
    %v707 = vadd.f32 0.0, %v706
    %v708 = vpop.f32.mrb[0].mxu0
    %v709 = vpop.f32.mrb[0].mxu0
    %v710 = vadd.f32 0.0, %v709
    %v711 = vpop.f32.mrb[0].mxu0
    %712 = vmatprep.mubr.bf16.mxu0 0
    %713 = vmatmul.mubr.bf16.gmra.mrb[0].mxu0 %v647
    %v714 = vpop.f32.mrb[0].mxu0
    %v715 = vadd.f32 0.0, %v714
    %v716 = vpop.f32.mrb[0].mxu0
    %v717 = vpop.f32.mrb[0].mxu0
    %v718 = vadd.f32 0.0, %v717
    %v719 = vpop.f32.mrb[0].mxu0
    %720 = vmatprep.mubr.bf16.mxu0 0
    %721 = vmatmul.mubr.bf16.gmra.mrb[0].mxu0 %v650
    %v722 = vpop.f32.mrb[0].mxu0
    %v723 = vadd.f32 0.0, %v722
    %v724 = vpop.f32.mrb[0].mxu0
    %v725 = vpop.f32.mrb[0].mxu0
    %v726 = vadd.f32 0.0, %v725
    %v727 = vpop.f32.mrb[0].mxu0
    %728 = vmatprep.mubr.bf16.mxu0 0
    %729 = vmatmul.mubr.bf16.gmra.mrb[0].mxu0 %v653
    %v730 = vpop.f32.mrb[0].mxu0
    %v731 = vadd.f32 0.0, %v730
    %v732 = vpop.f32.mrb[0].mxu0
    %v733 = vpop.f32.mrb[0].mxu0
    %v734 = vadd.f32 0.0, %v733
    %v735 = vpop.f32.mrb[0].mxu0
    %736 = vmatprep.mubr.bf16.mxu0 0
    %737 = vmatmul.mubr.bf16.gmra.mrb[0].mxu0 %v656
    %v738 = vpop.f32.mrb[0].mxu0
    %v739 = vadd.f32 0.0, %v738
    %v740 = vpop.f32.mrb[0].mxu0
    %v741 = vpop.f32.mrb[0].mxu0
    %v742 = vadd.f32 0.0, %v741
    %v743 = vpop.f32.mrb[0].mxu0
    %744 = vmatprep.mubr.bf16.mxu0 0
    %745 = vmatmul.mubr.bf16.gmra.mrb[0].mxu0 %v659
    %v746 = vpop.f32.mrb[0].mxu0
    %v747 = vadd.f32 0.0, %v746
    %v748 = vpop.f32.mrb[0].mxu0
    %v749 = vpop.f32.mrb[0].mxu0
    %v750 = vadd.f32 0.0, %v749
    %v751 = vpop.f32.mrb[0].mxu0
    %752 = vmatprep.mubr.bf16.mxu0 0
    %753 = vmatmul.mubr.bf16.gmra.mrb[0].mxu0 %v662
    %v754 = vpop.f32.mrb[0].mxu0
    %v755 = vadd.f32 0.0, %v754
    %v756 = vpop.f32.mrb[0].mxu0
    %v757 = vpop.f32.mrb[0].mxu0
    %v758 = vadd.f32 0.0, %v757
    %v759 = vpop.f32.mrb[0].mxu0
    %760 = vdwg.mxu0
    %v761 = vpack.c.bf16 %v702, %v699
    %v762 = vpack.c.bf16 %v710, %v707
    %v763 = vpack.c.bf16 %v718, %v715
    %v764 = vpack.c.bf16 %v726, %v723
    %v765 = vpack.c.bf16 %v734, %v731
    %v766 = vpack.c.bf16 %v742, %v739
    %v767 = vpack.c.bf16 %v750, %v747
    %v768 = vpack.c.bf16 %v758, %v755
    %769 = vmatprep.subr.bf16.mxu0 0
    %770 = vmatpush1.bf16.msra.mxu0 %v761
    %771 = vmatprep.subr.bf16.mxu0 0
    %772 = vmatpush1.bf16.msra.mxu0 %v762
    %773 = vmatprep.subr.bf16.mxu0 0
    %774 = vmatpush1.bf16.msra.mxu0 %v763
    %775 = vmatprep.subr.bf16.mxu0 0
    %776 = vmatpush1.bf16.msra.mxu0 %v764
    %777 = vmatprep.subr.bf16.mxu0 0
    %778 = vmatpush1.bf16.msra.mxu0 %v765
    %779 = vmatprep.subr.bf16.mxu0 0
    %780 = vmatpush1.bf16.msra.mxu0 %v766
    %781 = vmatprep.subr.bf16.mxu0 0
    %782 = vmatpush1.bf16.msra.mxu0 %v767
    %783 = vmatprep.subr.bf16.mxu0 0
    %784 = vmatpush1.bf16.msra.mxu0 %v768
    %785 = vmatprep.subr.bf16.mxu0 0
    %786 = vmatpush1.bf16.msra.mxu0 0
    %787 = vmatprep.subr.bf16.mxu0 0
    %788 = vmatpush1.bf16.msra.mxu0 0
    %789 = vmatprep.subr.bf16.mxu0 0
    %790 = vmatpush1.bf16.msra.mxu0 0
    %791 = vmatprep.subr.bf16.mxu0 0
    %792 = vmatpush1.bf16.msra.mxu0 0
    %793 = vmatprep.subr.bf16.mxu0 0
    %794 = vmatpush1.bf16.msra.mxu0 0
    %795 = vmatprep.subr.bf16.mxu0 0
    %796 = vmatpush1.bf16.msra.mxu0 0
    %797 = vmatprep.subr.bf16.mxu0 0
    %798 = vmatpush1.bf16.msra.mxu0 0
    %799 = vmatprep.subr.bf16.mxu0 0
    %800 = vmatpush1.bf16.msra.mxu0 0
    %801 = vmatprep.mubr.bf16.mxu0 0
    %802 = vmatmul.mubr.bf16.gmra.mrb[0].mxu0 %v613
    %v803 = vpop.f32.mrb[0].mxu0
    %v804 = vadd.f32 0.0, %v803
    %v805 = vpop.f32.mrb[0].mxu0
    %v806 = vpop.f32.mrb[0].mxu0
    %v807 = vadd.f32 0.0, %v806
    %v808 = vpop.f32.mrb[0].mxu0
    %809 = vdwg.mxu0
    %810 = vmatprep.subr.bf16.mxu0 0
    %811 = vmatpush1.bf16.msra.mxu0 %v544
    %812 = vmatprep.subr.bf16.mxu0 0
    %813 = vmatpush1.bf16.msra.mxu0 %v545
    %814 = vmatprep.subr.bf16.mxu0 0
    %815 = vmatpush1.bf16.msra.mxu0 %v546
    %816 = vmatprep.subr.bf16.mxu0 0
    %817 = vmatpush1.bf16.msra.mxu0 %v547
    %818 = vmatprep.subr.bf16.mxu0 0
    %819 = vmatpush1.bf16.msra.mxu0 %v548
    %820 = vmatprep.subr.bf16.mxu0 0
    %821 = vmatpush1.bf16.msra.mxu0 %v549
    %822 = vmatprep.subr.bf16.mxu0 0
    %823 = vmatpush1.bf16.msra.mxu0 %v550
    %824 = vmatprep.subr.bf16.mxu0 0
    %825 = vmatpush1.bf16.msra.mxu0 %v551
    %826 = vmatprep.subr.bf16.mxu0 0
    %827 = vmatpush1.bf16.msra.mxu0 0
    %828 = vmatprep.subr.bf16.mxu0 0
    %829 = vmatpush1.bf16.msra.mxu0 0
    %830 = vmatprep.subr.bf16.mxu0 0
    %831 = vmatpush1.bf16.msra.mxu0 0
    %832 = vmatprep.subr.bf16.mxu0 0
    %833 = vmatpush1.bf16.msra.mxu0 0
    %834 = vmatprep.subr.bf16.mxu0 0
    %835 = vmatpush1.bf16.msra.mxu0 0
    %836 = vmatprep.subr.bf16.mxu0 0
    %837 = vmatpush1.bf16.msra.mxu0 0
    %838 = vmatprep.subr.bf16.mxu0 0
    %839 = vmatpush1.bf16.msra.mxu0 0
    %840 = vmatprep.subr.bf16.mxu0 0
    %841 = vmatpush1.bf16.msra.mxu0 0
    %842 = vmatprep.mubr.bf16.mxu0 0
    %843 = vmatmul.mubr.bf16.gmra.mrb[0].mxu0 %v395
    %v844 = vpop.f32.mrb[0].mxu0
    %v845 = vadd.f32 %v804, %v844
    %v846 = vpop.f32.mrb[0].mxu0
    %v847 = vpop.f32.mrb[0].mxu0
    %v848 = vadd.f32 %v807, %v847
    %v849 = vpop.f32.mrb[0].mxu0
    %850 = vdwg.mxu0
    %v851 = vmul.f32 %v135, %v845
    %v852 = vmul.f32 %v136, %v848
    %v854 = vlaneseq
    %v855 = vshrl.u32 %v854, 7
    %v856 = vsub.s32 0, %v855
    %v857 = vrot.slane %v167, %v856
    %v859 = vadd.f32 %v851, %v857
    %v860 = vadd.f32 %v852, %v857
    %v861 = vmax.f32 %v859, 0.0
    %v862 = vmax.f32 %v860, 0.0
    %v863 = vpack.c.bf16 %v862, %v861
    %v864 = vld [vmem:[#allocation10] sm:$0xf]
    %v865 = vld [vmem:[#allocation10 + $0x4] sm:$0xf]
    %v866 = vld [vmem:[#allocation10 + $0x8] sm:$0xf]
    %v867 = vld [vmem:[#allocation10 + $0xc] sm:$0xf]
    %v868 = vld [vmem:[#allocation10 + $0x10] sm:$0xf]
    %v869 = vld [vmem:[#allocation10 + $0x14] sm:$0xf]
    %v870 = vld [vmem:[#allocation10 + $0x18] sm:$0xf]
    %v871 = vld [vmem:[#allocation10 + $0x1c] sm:$0xf]
    %v872 = vld [vmem:[#allocation10 + $0x20] sm:$0xf]
    %v873 = vld [vmem:[#allocation10 + $0x24] sm:$0xf]
    %v874 = vld [vmem:[#allocation10 + $0x28] sm:$0xf]
    %v875 = vld [vmem:[#allocation10 + $0x2c] sm:$0xf]
    %v876 = vld [vmem:[#allocation10 + $0x30] sm:$0xf]
    %v877 = vld [vmem:[#allocation10 + $0x34] sm:$0xf]
    %v878 = vld [vmem:[#allocation10 + $0x38] sm:$0xf]
    %v879 = vld [vmem:[#allocation10 + $0x3c] sm:$0xf]
    %v880 = vld [vmem:[#allocation11] sm:$0xf]
    %v881 = vld [vmem:[#allocation11 + $0x4] sm:$0xf]
    %v882 = vld [vmem:[#allocation11 + $0x8] sm:$0xf]
    %v883 = vld [vmem:[#allocation11 + $0xc] sm:$0xf]
    %v884 = vld [vmem:[#allocation11 + $0x10] sm:$0xf]
    %v885 = vld [vmem:[#allocation11 + $0x14] sm:$0xf]
    %v886 = vld [vmem:[#allocation11 + $0x18] sm:$0xf]
    %v887 = vld [vmem:[#allocation11 + $0x1c] sm:$0xf]
    %v888 = vld [vmem:[#allocation11 + $0x20] sm:$0xf]
    %v889 = vld [vmem:[#allocation11 + $0x24] sm:$0xf]
    %v890 = vld [vmem:[#allocation11 + $0x28] sm:$0xf]
    %v891 = vld [vmem:[#allocation11 + $0x2c] sm:$0xf]
    %v892 = vld [vmem:[#allocation11 + $0x30] sm:$0xf]
    %v893 = vld [vmem:[#allocation11 + $0x34] sm:$0xf]
    %v894 = vld [vmem:[#allocation11 + $0x38] sm:$0xf]
    %v895 = vld [vmem:[#allocation11 + $0x3c] sm:$0xf]
    %v896 = vld [vmem:[%s8] sm:$0x1]
    %v913 = vunpack.c.l.b16 %v864
    %v914 = vunpack.c.l.b16 %v865
    %v915 = vunpack.c.l.b16 %v866
    %v916 = vunpack.c.l.b16 %v867
    %v917 = vunpack.c.l.b16 %v868
    %v918 = vunpack.c.l.b16 %v869
    %v919 = vunpack.c.l.b16 %v870
    %v920 = vunpack.c.l.b16 %v871
    %v921 = vunpack.c.l.b16 %v872
    %v922 = vunpack.c.l.b16 %v873
    %v923 = vunpack.c.l.b16 %v874
    %v924 = vunpack.c.l.b16 %v875
    %v925 = vunpack.c.l.b16 %v876
    %v926 = vunpack.c.l.b16 %v877
    %v927 = vunpack.c.l.b16 %v878
    %v928 = vunpack.c.l.b16 %v879
    %v929 = vpack.c.b16 %v914, %v913
    %v930 = vpack.c.b16 %v916, %v915
    %v931 = vpack.c.b16 %v918, %v917
    %v932 = vpack.c.b16 %v920, %v919
    %v933 = vpack.c.b16 %v922, %v921
    %v934 = vpack.c.b16 %v924, %v923
    %v935 = vpack.c.b16 %v926, %v925
    %v936 = vpack.c.b16 %v928, %v927
    %945 = vmatprep.subr.bf16.mxu0 0
    %946 = vmatpush1.bf16.msra.mxu0 %v929
    %947 = vmatprep.subr.bf16.mxu0 0
    %948 = vmatpush1.bf16.msra.mxu0 %v930
    %949 = vmatprep.subr.bf16.mxu0 0
    %950 = vmatpush1.bf16.msra.mxu0 %v931
    %951 = vmatprep.subr.bf16.mxu0 0
    %952 = vmatpush1.bf16.msra.mxu0 %v932
    %953 = vmatprep.subr.bf16.mxu0 0
    %954 = vmatpush1.bf16.msra.mxu0 %v933
    %955 = vmatprep.subr.bf16.mxu0 0
    %956 = vmatpush1.bf16.msra.mxu0 %v934
    %957 = vmatprep.subr.bf16.mxu0 0
    %958 = vmatpush1.bf16.msra.mxu0 %v935
    %959 = vmatprep.subr.bf16.mxu0 0
    %960 = vmatpush1.bf16.msra.mxu0 %v936
    %961 = vmatprep.subr.bf16.mxu0 0
    %962 = vmatpush1.bf16.msra.mxu0 0
    %963 = vmatprep.subr.bf16.mxu0 0
    %964 = vmatpush1.bf16.msra.mxu0 0
    %965 = vmatprep.subr.bf16.mxu0 0
    %966 = vmatpush1.bf16.msra.mxu0 0
    %967 = vmatprep.subr.bf16.mxu0 0
    %968 = vmatpush1.bf16.msra.mxu0 0
    %969 = vmatprep.subr.bf16.mxu0 0
    %970 = vmatpush1.bf16.msra.mxu0 0
    %971 = vmatprep.subr.bf16.mxu0 0
    %972 = vmatpush1.bf16.msra.mxu0 0
    %973 = vmatprep.subr.bf16.mxu0 0
    %974 = vmatpush1.bf16.msra.mxu0 0
    %975 = vmatprep.subr.bf16.mxu0 0
    %976 = vmatpush1.bf16.msra.mxu0 0
    %977 = vmatprep.mubr.bf16.mxu0 0
    %978 = vmatmul.mubr.bf16.gmra.mrb[0].mxu0 %v863
    %v979 = vpop.f32.mrb[0].mxu0
    %v980 = vadd.f32 0.0, %v979
    %v981 = vpop.f32.mrb[0].mxu0
    %v982 = vpop.f32.mrb[0].mxu0
    %v983 = vadd.f32 0.0, %v982
    %v984 = vpop.f32.mrb[0].mxu0
    %985 = vdwg.mxu0
    %v986 = vpack.c.bf16 %v983, %v980
    %v1003 = vunpack.c.l.b16 %v880
    %v1004 = vunpack.c.l.b16 %v881
    %v1005 = vunpack.c.l.b16 %v882
    %v1006 = vunpack.c.l.b16 %v883
    %v1007 = vunpack.c.l.b16 %v884
    %v1008 = vunpack.c.l.b16 %v885
    %v1009 = vunpack.c.l.b16 %v886
    %v1010 = vunpack.c.l.b16 %v887
    %v1011 = vunpack.c.l.b16 %v888
    %v1012 = vunpack.c.l.b16 %v889
    %v1013 = vunpack.c.l.b16 %v890
    %v1014 = vunpack.c.l.b16 %v891
    %v1015 = vunpack.c.l.b16 %v892
    %v1016 = vunpack.c.l.b16 %v893
    %v1017 = vunpack.c.l.b16 %v894
    %v1018 = vunpack.c.l.b16 %v895
    %v1019 = vpack.c.b16 %v1004, %v1003
    %v1020 = vpack.c.b16 %v1006, %v1005
    %v1021 = vpack.c.b16 %v1008, %v1007
    %v1022 = vpack.c.b16 %v1010, %v1009
    %v1023 = vpack.c.b16 %v1012, %v1011
    %v1024 = vpack.c.b16 %v1014, %v1013
    %v1025 = vpack.c.b16 %v1016, %v1015
    %v1026 = vpack.c.b16 %v1018, %v1017
    %1035 = vmatprep.subr.bf16.mxu0 0
    %1036 = vmatpush1.bf16.msra.mxu0 %v1019
    %1037 = vmatprep.subr.bf16.mxu0 0
    %1038 = vmatpush1.bf16.msra.mxu0 %v1020
    %1039 = vmatprep.subr.bf16.mxu0 0
    %1040 = vmatpush1.bf16.msra.mxu0 %v1021
    %1041 = vmatprep.subr.bf16.mxu0 0
    %1042 = vmatpush1.bf16.msra.mxu0 %v1022
    %1043 = vmatprep.subr.bf16.mxu0 0
    %1044 = vmatpush1.bf16.msra.mxu0 %v1023
    %1045 = vmatprep.subr.bf16.mxu0 0
    %1046 = vmatpush1.bf16.msra.mxu0 %v1024
    %1047 = vmatprep.subr.bf16.mxu0 0
    %1048 = vmatpush1.bf16.msra.mxu0 %v1025
    %1049 = vmatprep.subr.bf16.mxu0 0
    %1050 = vmatpush1.bf16.msra.mxu0 %v1026
    %1051 = vmatprep.subr.bf16.mxu0 0
    %1052 = vmatpush1.bf16.msra.mxu0 0
    %1053 = vmatprep.subr.bf16.mxu0 0
    %1054 = vmatpush1.bf16.msra.mxu0 0
    %1055 = vmatprep.subr.bf16.mxu0 0
    %1056 = vmatpush1.bf16.msra.mxu0 0
    %1057 = vmatprep.subr.bf16.mxu0 0
    %1058 = vmatpush1.bf16.msra.mxu0 0
    %1059 = vmatprep.subr.bf16.mxu0 0
    %1060 = vmatpush1.bf16.msra.mxu0 0
    %1061 = vmatprep.subr.bf16.mxu0 0
    %1062 = vmatpush1.bf16.msra.mxu0 0
    %1063 = vmatprep.subr.bf16.mxu0 0
    %1064 = vmatpush1.bf16.msra.mxu0 0
    %1065 = vmatprep.subr.bf16.mxu0 0
    %1066 = vmatpush1.bf16.msra.mxu0 0
    %1067 = vmatprep.mubr.bf16.mxu0 0
    %1068 = vmatmul.mubr.bf16.gmra.mrb[0].mxu0 %v986
    %v1069 = vpop.f32.mrb[0].mxu0
    %v1070 = vadd.f32 0.0, %v1069
    %v1071 = vpop.f32.mrb[0].mxu0
    %v1072 = vpop.f32.mrb[0].mxu0
    %v1073 = vadd.f32 0.0, %v1072
    %v1074 = vpop.f32.mrb[0].mxu0
    %1075 = vdwg.mxu0
    %1077 = vset.pattern.permute.xlu0 1
    %1078 = vperm.xlu0 %1077, %v1070
    %v1079 = vpop.permute.xlu0 %1078
    %1082 = vset.pattern.permute.xlu0 1
    %1083 = vperm.xlu0 %1082, %v1073
    %v1084 = vpop.permute.xlu0 %1083
    %v1086 = vmul.f32 %v116, %v1079
    %v1087 = vmul.f32 %v117, %v1084
    %v1088 = vadd.f32 %v1086, %v1087
    %v1089 = vrot.slane %v1088, 4
    %v1090 = vadd.f32 %v1088, %v1089
    %v1091 = vrot.slane %v1090, 2
    %v1092 = vadd.f32 %v1090, %v1091
    %v1093 = vrot.slane %v1092, 1
    %v1094 = vadd.f32 %v1092, %v1093
    %1095 = vset.pattern.permute.xlu0 0
    %1096 = vperm.xlu0 %1095, %v1070
    %v1097 = vpop.permute.xlu0 %1096
    %1099 = vset.pattern.permute.xlu0 0
    %1100 = vperm.xlu0 %1099, %v1073
    %v1101 = vpop.permute.xlu0 %1100
    %v1103 = vadd.f32 %v1097, %v1094
    %v1104 = vadd.f32 %v1101, %v1094
    %v1105 = vmul.f32 %v1103, 0.2
    %v1106 = vmul.f32 %v1104, 0.2
    %v1107 = vmax.f32 %v1103, %v1105
    %v1108 = vmax.f32 %v1104, %v1106
    %v1109 = vsel %vm118, %v1107, -1e+30
    %v1110 = vsel %vm119, %v1108, -1e+30
    %1111 = vmax.xlane.f32.xlu0 %v1109
    %v1112 = vpop.xlane.xlu0 %1111
    %1113 = vmax.xlane.f32.xlu0 %v1110
    %v1114 = vpop.xlane.xlu0 %1113
    %v1115 = vsel %vm131, %v1112, 0.0
    %v1116 = vsel %vm132, %v1114, 0.0
    %v1117 = vsub.f32 %v1107, %v1115
    %v1118 = vsub.f32 %v1108, %v1116
    %v1119 = vmul.f32 %v1117, 1.442695
    %v1120 = vpow.pop %v1119
    %v1121 = vmul.f32 %v1118, 1.442695
    %v1122 = vpow.pop %v1121
    %v1123 = vsel %vm118, %v1120, 0.0
    %v1124 = vsel %vm119, %v1122, 0.0
    %1125 = vadd.xlane.f32.xlu0 %v1123
    %v1126 = vpop.xlane.xlu0 %1125
    %1127 = vadd.xlane.f32.xlu0 %v1124
    %v1128 = vpop.xlane.xlu0 %1127
    %vm1129 = vcmp.gt.f32.partialorder %v1126, 0.0
    %vm1130 = vcmp.gt.f32.partialorder %v1128, 0.0
    %v1131 = vrcp.pop %v1126
    %v1132 = vmul.f32 1.0, %v1131
    %v1133 = vrcp.pop %v1128
    %v1134 = vmul.f32 1.0, %v1133
    %v1135 = vsel %vm1129, %v1132, 0.0
    %v1136 = vsel %vm1130, %v1134, 0.0
    %v1137 = vmul.f32 %v1123, %v1135
    %v1138 = vmul.f32 %v1124, %v1136
    %v1139 = vpack.c.bf16 %v1138, %v1137
    %v1140 = vmul.f32 %v1137, %v139
    %v1141 = vmul.f32 %v1138, %v139
    %v1142 = vpack.c.bf16 %v1141, %v1140
    %1143 = vxpose.xlu0.c.b16.start [1/8] %v1142, 128
    %1144 = vxpose.xlu0.c.b16.cont [2/8] 0, 128
    %1145 = vxpose.xlu0.c.b16.cont [3/8] 0, 128
    %1146 = vxpose.xlu0.c.b16.cont [4/8] 0, 128
    %1147 = vxpose.xlu0.c.b16.cont [5/8] 0, 128
    %1148 = vxpose.xlu0.c.b16.cont [6/8] 0, 128
    %1149 = vxpose.xlu0.c.b16.cont [7/8] 0, 128
    %1150 = vxpose.xlu0.c.b16.end [8/8] 0, 128
    %v1151 = vpop.trf.xlu0
    %v1152 = vpop.trf.xlu0
    %v1153 = vpop.trf.xlu0
    %v1154 = vpop.trf.xlu0
    %v1155 = vpop.trf.xlu0
    %v1156 = vpop.trf.xlu0
    %v1157 = vpop.trf.xlu0
    %v1158 = vpop.trf.xlu0
    %v1160 = vsel %vm422, %v1151, 0
    %v1163 = vsel %vm422, %v1152, 0
    %v1166 = vsel %vm422, %v1153, 0
    %v1169 = vsel %vm422, %v1154, 0
    %v1172 = vsel %vm422, %v1155, 0
    %v1175 = vsel %vm422, %v1156, 0
    %v1178 = vsel %vm422, %v1157, 0
    %v1181 = vsel %vm422, %v1158, 0
    %1183 = vmatprep.subr.bf16.mxu0 0
    %1184 = vmatpush1.bf16.msra.mxu0 %v986
    %1185 = vmatprep.subr.bf16.mxu0 0
    %1186 = vmatpush1.bf16.msra.mxu0 0
    %1187 = vmatprep.subr.bf16.mxu0 0
    %1188 = vmatpush1.bf16.msra.mxu0 0
    %1189 = vmatprep.subr.bf16.mxu0 0
    %1190 = vmatpush1.bf16.msra.mxu0 0
    %1191 = vmatprep.subr.bf16.mxu0 0
    %1192 = vmatpush1.bf16.msra.mxu0 0
    %1193 = vmatprep.subr.bf16.mxu0 0
    %1194 = vmatpush1.bf16.msra.mxu0 0
    %1195 = vmatprep.subr.bf16.mxu0 0
    %1196 = vmatpush1.bf16.msra.mxu0 0
    %1197 = vmatprep.subr.bf16.mxu0 0
    %1198 = vmatpush1.bf16.msra.mxu0 0
    %1199 = vmatprep.subr.bf16.mxu0 0
    %1200 = vmatpush1.bf16.msra.mxu0 0
    %1201 = vmatprep.subr.bf16.mxu0 0
    %1202 = vmatpush1.bf16.msra.mxu0 0
    %1203 = vmatprep.subr.bf16.mxu0 0
    %1204 = vmatpush1.bf16.msra.mxu0 0
    %1205 = vmatprep.subr.bf16.mxu0 0
    %1206 = vmatpush1.bf16.msra.mxu0 0
    %1207 = vmatprep.subr.bf16.mxu0 0
    %1208 = vmatpush1.bf16.msra.mxu0 0
    %1209 = vmatprep.subr.bf16.mxu0 0
    %1210 = vmatpush1.bf16.msra.mxu0 0
    %1211 = vmatprep.subr.bf16.mxu0 0
    %1212 = vmatpush1.bf16.msra.mxu0 0
    %1213 = vmatprep.subr.bf16.mxu0 0
    %1214 = vmatpush1.bf16.msra.mxu0 0
    %1215 = vmatprep.mubr.bf16.mxu0 0
    %1216 = vmatmul.mubr.bf16.gmra.mrb[0].mxu0 %v1160
    %v1217 = vpop.f32.mrb[0].mxu0
    %v1218 = vadd.f32 0.0, %v1217
    %v1219 = vpop.f32.mrb[0].mxu0
    %v1220 = vpop.f32.mrb[0].mxu0
    %v1221 = vadd.f32 0.0, %v1220
    %v1222 = vpop.f32.mrb[0].mxu0
    %1223 = vmatprep.mubr.bf16.mxu0 0
    %1224 = vmatmul.mubr.bf16.gmra.mrb[0].mxu0 %v1163
    %v1225 = vpop.f32.mrb[0].mxu0
    %v1226 = vadd.f32 0.0, %v1225
    %v1227 = vpop.f32.mrb[0].mxu0
    %v1228 = vpop.f32.mrb[0].mxu0
    %v1229 = vadd.f32 0.0, %v1228
    %v1230 = vpop.f32.mrb[0].mxu0
    %1231 = vmatprep.mubr.bf16.mxu0 0
    %1232 = vmatmul.mubr.bf16.gmra.mrb[0].mxu0 %v1166
    %v1233 = vpop.f32.mrb[0].mxu0
    %v1234 = vadd.f32 0.0, %v1233
    %v1235 = vpop.f32.mrb[0].mxu0
    %v1236 = vpop.f32.mrb[0].mxu0
    %v1237 = vadd.f32 0.0, %v1236
    %v1238 = vpop.f32.mrb[0].mxu0
    %1239 = vmatprep.mubr.bf16.mxu0 0
    %1240 = vmatmul.mubr.bf16.gmra.mrb[0].mxu0 %v1169
    %v1241 = vpop.f32.mrb[0].mxu0
    %v1242 = vadd.f32 0.0, %v1241
    %v1243 = vpop.f32.mrb[0].mxu0
    %v1244 = vpop.f32.mrb[0].mxu0
    %v1245 = vadd.f32 0.0, %v1244
    %v1246 = vpop.f32.mrb[0].mxu0
    %1247 = vmatprep.mubr.bf16.mxu0 0
    %1248 = vmatmul.mubr.bf16.gmra.mrb[0].mxu0 %v1172
    %v1249 = vpop.f32.mrb[0].mxu0
    %v1250 = vadd.f32 0.0, %v1249
    %v1251 = vpop.f32.mrb[0].mxu0
    %v1252 = vpop.f32.mrb[0].mxu0
    %v1253 = vadd.f32 0.0, %v1252
    %v1254 = vpop.f32.mrb[0].mxu0
    %1255 = vmatprep.mubr.bf16.mxu0 0
    %1256 = vmatmul.mubr.bf16.gmra.mrb[0].mxu0 %v1175
    %v1257 = vpop.f32.mrb[0].mxu0
    %v1258 = vadd.f32 0.0, %v1257
    %v1259 = vpop.f32.mrb[0].mxu0
    %v1260 = vpop.f32.mrb[0].mxu0
    %v1261 = vadd.f32 0.0, %v1260
    %v1262 = vpop.f32.mrb[0].mxu0
    %1263 = vmatprep.mubr.bf16.mxu0 0
    %1264 = vmatmul.mubr.bf16.gmra.mrb[0].mxu0 %v1178
    %v1265 = vpop.f32.mrb[0].mxu0
    %v1266 = vadd.f32 0.0, %v1265
    %v1267 = vpop.f32.mrb[0].mxu0
    %v1268 = vpop.f32.mrb[0].mxu0
    %v1269 = vadd.f32 0.0, %v1268
    %v1270 = vpop.f32.mrb[0].mxu0
    %1271 = vmatprep.mubr.bf16.mxu0 0
    %1272 = vmatmul.mubr.bf16.gmra.mrb[0].mxu0 %v1181
    %v1273 = vpop.f32.mrb[0].mxu0
    %v1274 = vadd.f32 0.0, %v1273
    %v1275 = vpop.f32.mrb[0].mxu0
    %v1276 = vpop.f32.mrb[0].mxu0
    %v1277 = vadd.f32 0.0, %v1276
    %v1278 = vpop.f32.mrb[0].mxu0
    %1279 = vdwg.mxu0
    %v1280 = vpack.c.bf16 %v1221, %v1218
    %v1281 = vpack.c.bf16 %v1229, %v1226
    %v1282 = vpack.c.bf16 %v1237, %v1234
    %v1283 = vpack.c.bf16 %v1245, %v1242
    %v1284 = vpack.c.bf16 %v1253, %v1250
    %v1285 = vpack.c.bf16 %v1261, %v1258
    %v1286 = vpack.c.bf16 %v1269, %v1266
    %v1287 = vpack.c.bf16 %v1277, %v1274
    %1288 = vmatprep.subr.bf16.mxu0 0
    %1289 = vmatpush1.bf16.msra.mxu0 %v1280
    %1290 = vmatprep.subr.bf16.mxu0 0
    %1291 = vmatpush1.bf16.msra.mxu0 %v1281
    %1292 = vmatprep.subr.bf16.mxu0 0
    %1293 = vmatpush1.bf16.msra.mxu0 %v1282
    %1294 = vmatprep.subr.bf16.mxu0 0
    %1295 = vmatpush1.bf16.msra.mxu0 %v1283
    %1296 = vmatprep.subr.bf16.mxu0 0
    %1297 = vmatpush1.bf16.msra.mxu0 %v1284
    %1298 = vmatprep.subr.bf16.mxu0 0
    %1299 = vmatpush1.bf16.msra.mxu0 %v1285
    %1300 = vmatprep.subr.bf16.mxu0 0
    %1301 = vmatpush1.bf16.msra.mxu0 %v1286
    %1302 = vmatprep.subr.bf16.mxu0 0
    %1303 = vmatpush1.bf16.msra.mxu0 %v1287
    %1304 = vmatprep.subr.bf16.mxu0 0
    %1305 = vmatpush1.bf16.msra.mxu0 0
    %1306 = vmatprep.subr.bf16.mxu0 0
    %1307 = vmatpush1.bf16.msra.mxu0 0
    %1308 = vmatprep.subr.bf16.mxu0 0
    %1309 = vmatpush1.bf16.msra.mxu0 0
    %1310 = vmatprep.subr.bf16.mxu0 0
    %1311 = vmatpush1.bf16.msra.mxu0 0
    %1312 = vmatprep.subr.bf16.mxu0 0
    %1313 = vmatpush1.bf16.msra.mxu0 0
    %1314 = vmatprep.subr.bf16.mxu0 0
    %1315 = vmatpush1.bf16.msra.mxu0 0
    %1316 = vmatprep.subr.bf16.mxu0 0
    %1317 = vmatpush1.bf16.msra.mxu0 0
    %1318 = vmatprep.subr.bf16.mxu0 0
    %1319 = vmatpush1.bf16.msra.mxu0 0
    %1320 = vmatprep.mubr.bf16.mxu0 0
    %1321 = vmatmul.mubr.bf16.gmra.mrb[0].mxu0 %v1139
    %v1322 = vpop.f32.mrb[0].mxu0
    %v1323 = vadd.f32 0.0, %v1322
    %v1324 = vpop.f32.mrb[0].mxu0
    %v1325 = vpop.f32.mrb[0].mxu0
    %v1326 = vadd.f32 0.0, %v1325
    %v1327 = vpop.f32.mrb[0].mxu0
    %1328 = vdwg.mxu0
    %v1329 = vmul.f32 %v135, %v1323
    %v1330 = vmul.f32 %v136, %v1326
    %v1332 = vlaneseq
    %v1333 = vshrl.u32 %v1332, 7
    %v1334 = vsub.s32 0, %v1333
    %v1335 = vrot.slane %v896, %v1334
    %v1337 = vadd.f32 %v1329, %v1335
    %v1338 = vadd.f32 %v1330, %v1335
    %v1339 = vlaneseq
    %v1340 = vand.u32 %v1339, 127
    %vm1341 = vcmp.lt.s32.totalorder %v1340, 4
    %v1342 = vsel %vm1341, %v1337, -1e+30
    %v1343 = vsel %vm1341, %v1338, -1e+30
    %1344 = vmax.xlane.f32.xlu0 %v1342
    %v1345 = vpop.xlane.xlu0 %1344
    %1346 = vmax.xlane.f32.xlu0 %v1343
    %v1347 = vpop.xlane.xlu0 %1346
    %v1348 = vsub.f32 %v1337, %v1345
    %v1349 = vsub.f32 %v1338, %v1347
    %v1350 = vmul.f32 %v1348, 1.442695
    %v1351 = vpow.pop %v1350
    %v1352 = vmul.f32 %v1349, 1.442695
    %v1353 = vpow.pop %v1352
    %v1354 = vsel %vm1341, %v1351, 0.0
    %v1355 = vsel %vm1341, %v1353, 0.0
    %1356 = vadd.xlane.f32.xlu0 %v1354
    %v1357 = vpop.xlane.xlu0 %1356
    %1358 = vadd.xlane.f32.xlu0 %v1355
    %v1359 = vpop.xlane.xlu0 %1358
    %v1360 = vlog2.pop %v1357
    %v1361 = vmul.f32 %v1360, 0.6931472
    %v1362 = vlog2.pop %v1359
    %v1363 = vmul.f32 %v1362, 0.6931472
    %v1364 = vsub.f32 %v1348, %v1361
    %v1365 = vsub.f32 %v1349, %v1363
    %v1366 = vsel %vm1341, %v1364, 0.0
    %v1367 = vsel %vm1341, %v1365, 0.0
    %1368 = vst [vmem:[#allocation13] sm:$0xff] %v1366
    %1369 = vst [vmem:[#allocation13 + $0x8] sm:$0xff] %v1367
    // Predicated region
    $region62: #{tpu_custom_call.1} parent=1 // pred_check
      _
    $region63: #{tpu_custom_call.1} parent=1 // pred_check_branch
      %1371 = sbr.rel (0) target = $region65
    $region64: #{tpu_custom_call.1} parent=1 // pred_region
      %s1373 = ssub.s32 256, 256
      %1374 = vsyncadd [#allocation4], %s1373
      %s1375 = sshll.u32 [#allocation13], 4
      %s1376 = int_to_ptr.vmem [resolvable:$true] %s1375
      %1381 = dma.vmem_to_hbm [thread:$0]  %s1376, 256, %s9, [#allocation4], 128, 128, 8
    $region65: #{tpu_custom_call.1} parent=1 // pred_fallthru
      _
    // Predicated region
    $region66: #{tpu_custom_call.1} parent=1 // pred_check
      _
    $region67: #{tpu_custom_call.1} parent=1 // pred_check_branch
      %1383 = sbr.rel (0) target = $region69
    $region68: #{tpu_custom_call.1} parent=1 // pred_region
      %1384 = dma.done [#allocation4], 256
    $region69: #{tpu_custom_call.1} parent=1 // pred_fallthru
      _
    %1385 = vsyncpa [#allocation3], 1
    %1386 = vsyncpa [#allocation6], 1
    %1387 = vsyncpa [#allocation9], 1
    %1388 = vsyncpa [#allocation12], 1
    %1389 = vsyncpa [#allocation4], 1

</llo_original>
